<compile_context>
chip_gen: v6e
topology: v6e:2x2x1
jax: 0.10.0
libtpu: 0.0.40
codegen_flags: <defaults>
</compile_context>

<pallas_src>
import jax
import jax.numpy as jnp
from jax.experimental import pallas as pl
from jax.experimental.pallas import tpu as pltpu


def _round_up(x, m):
    return ((x + m - 1) // m) * m


def _pick_tile(n_pad, max_tile, *, unit=128, min_blocks=1):
    """Largest multiple-of-`unit` divisor of n_pad that is <= max_tile,
    preferring ones that leave at least `min_blocks` blocks (megacore)."""
    cands = [t for t in range(unit, n_pad + 1, unit)
             if (n_pad % t == 0) and (t <= max_tile)]
    if not cands:
        return min(n_pad, max_tile)
    good = [t for t in cands if n_pad // t >= min_blocks]
    return max(good) if good else max(cands)


def _pick_vmem_limit():
    """Generation-aware scoped VMEM limit: ~64 MiB on 128-MiB parts (v5e/v6e),
    32 MiB on v7x; safe fallback if the query is unavailable."""
    try:
        cap = pltpu.get_tpu_info().vmem_capacity_bytes
    except Exception:
        return 32 * 1024 * 1024
    return int(min(100 * 1024 * 1024, max(32 * 1024 * 1024, cap // 2)))


def _make_gcn_kernel(apply_wu_in_epilogue, src_resident, tk):
    """Build the kernel body.

    apply_wu_in_epilogue=True  -> in_feats <= out_feats: aggregate raw feats,
                                  apply W_u once per row tile in the epilogue.
    apply_wu_in_epilogue=False -> in_feats >  out_feats: the aggregation source
                                  is already feat @ W_u (projected once, outside).
    src_resident=True          -> src_ref holds the whole (n_pad, s_pad) slab in
                                  VMEM; slice the current K tile in-kernel.
    """

    def kernel(norm_ref, featd_ref, src_ref, adj_ref, wu_ref, wv_ref, bias_ref,
               out_ref, acc_ref):
        k = pl.program_id(2)

        @pl.when(k == 0)
        def _init():
            acc_ref[...] = jnp.zeros_like(acc_ref)

        if src_resident:
            src = src_ref[pl.ds(pl.multiple_of(k * tk, tk), tk), :]
        else:
            src = src_ref[...]

        # Aggregation over in-neighbours for this (row tile, k tile):
        #   acc += A[i-tile, k-tile] @ src[k-tile]     (f32 accumulation)
        # Adjacency streams as int8 (0/1 exact) and is widened on the VPU.
        adj = adj_ref[...].astype(src.dtype)
        acc_ref[...] += jnp.dot(adj, src, preferred_element_type=jnp.float32)

        @pl.when(k == pl.num_programs(2) - 1)
        def _epilogue():
            acc = acc_ref[...]
            if apply_wu_in_epilogue:
                # Single compute-dtype MXU pass (no f32 upcast of W_u).
                rst_u = jnp.dot(acc.astype(wu_ref.dtype), wu_ref[...],
                                preferred_element_type=jnp.float32)
            else:
                rst_u = acc
            # rst_v is K-invariant: computed exactly once per row tile, here.
            rst_v = jnp.dot(featd_ref[...], wv_ref[...],
                            preferred_element_type=jnp.float32)
            out = rst_v + norm_ref[...] * rst_u + bias_ref[...]
            out_ref[...] = jnp.maximum(out, 0.0).astype(out_ref.dtype)

    return kernel


def gcn_layer(adj, feat, weight_u, weight_v, bias, *,
              compute_dtype=jnp.bfloat16, adj_storage_dtype=jnp.int8,
              max_row_tile=512, max_k_tile=2048):
    """
    adj:      [N, N] or [B, N, N]  dense 0/1 adjacency, adj[..., i, j] = 1 iff edge j -> i
    feat:     [N, Fin] or [B, N, Fin]
    weight_u: [Fin, Fout]
    weight_v: [Fin, Fout]
    bias:     [Fout]
    returns:  float32 [N, Fout] (or [B, N, Fout])
    """
    squeeze_batch = adj.ndim == 2
    if squeeze_batch:
        adj = adj[None]
        feat = feat[None]
    B, N, _ = adj.shape
    in_feats = feat.shape[-1]
    out_feats = weight_u.shape[-1]
    large_in = in_feats > out_feats

    cd = jnp.dtype(compute_dtype)
    adj_dt = jnp.dtype(adj_storage_dtype) if adj_storage_dtype is not None else cd

    # ---- hoisted, cheap preprocessing (XLA) --------------------------------
    # Degrees / norm from the exact 0/1 adjacency in f32, before any shrinking.
    degs = jnp.sum(adj.astype(jnp.float32), axis=-1, keepdims=True)   # [B,N,1]
    norm = 1.0 / jnp.maximum(degs, 1.0)

    fin_pad = _round_up(in_feats, 128)         # lane-dense src / acc / W rows
    fout_pad = _round_up(out_feats, 128)       # lane-dense output
    n_pad = _round_up(N, 128)                  # pad at 128 granularity only

    vmem_limit = _pick_vmem_limit()
    tm = _pick_tile(n_pad, max_row_tile, min_blocks=2 if B == 1 else 1)
    tk = _pick_tile(n_pad, max_k_tile)

    # Lane-dense padded operands (all padding is exact zeros).
    featd = jnp.pad(feat, ((0, 0), (0, n_pad - N),
                           (0, fin_pad - in_feats))).astype(cd)
    wu_p = jnp.pad(weight_u, ((0, fin_pad - in_feats),
                              (0, fout_pad - out_feats))).astype(cd)
    wv_p = jnp.pad(weight_v, ((0, fin_pad - in_feats),
                              (0, fout_pad - out_feats))).astype(cd)
    bias_p = jnp.pad(bias, (0, fout_pad - out_feats)).reshape(1, fout_pad)
    bias_p = bias_p.astype(jnp.float32)
    norm_p = jnp.pad(norm, ((0, 0), (0, n_pad - N), (0, 0)))
    # 0/1 adjacency is exact in int8 (default) / bf16 / f32.
    adj_p = jnp.pad(adj, ((0, 0), (0, n_pad - N), (0, n_pad - N))).astype(adj_dt)

    if large_in:
        # Module's flop-saving branch: project once, aggregate the narrower
        # projected features inside the kernel.
        src = jnp.matmul(featd, wu_p,
                         preferred_element_type=jnp.float32).astype(cd)
        s_pad = fout_pad
    else:
        src = featd
        s_pad = fin_pad

    # Keep the aggregation source fully VMEM-resident when it fits comfortably
    # (re-DMA only on batch change); otherwise stream one (tk, s_pad) tile per
    # reduction step.
    src_block_bytes = n_pad * s_pad * cd.itemsize
    src_resident = src_block_bytes <= min(8 * 1024 * 1024, vmem_limit // 6)
    if src_resident:
        src_spec = pl.BlockSpec((None, n_pad, s_pad), lambda b, i, k: (b, 0, 0))
    else:
        src_spec = pl.BlockSpec((None, tk, s_pad), lambda b, i, k: (b, k, 0))

    grid = (B, n_pad // tm, n_pad // tk)
    kernel = _make_gcn_kernel(apply_wu_in_epilogue=not large_in,
                              src_resident=src_resident, tk=tk)

    out_p = pl.pallas_call(
        kernel,
        out_shape=jax.ShapeDtypeStruct((B, n_pad, fout_pad), jnp.float32),
        grid_spec=pltpu.PrefetchScalarGridSpec(
            num_scalar_prefetch=0,
            grid=grid,
            in_specs=[
                # norm [B, n_pad, 1]: per row tile, constant over k
                pl.BlockSpec((None, tm, 1), lambda b, i, k: (b, i, 0)),
                # feat (dst rows) for rst_v: per row tile, constant over k
                pl.BlockSpec((None, tm, fin_pad), lambda b, i, k: (b, i, 0)),
                # aggregation source: VMEM-resident slab or per-k tile
                src_spec,
                # adjacency tile (dominant HBM traffic, int8, streamed per step)
                pl.BlockSpec((None, tm, tk), lambda b, i, k: (b, i, k)),
                # weights / bias: grid-constant index maps -> VMEM resident
                pl.BlockSpec((fin_pad, fout_pad), lambda b, i, k: (0, 0)),
                pl.BlockSpec((fin_pad, fout_pad), lambda b, i, k: (0, 0)),
                pl.BlockSpec((1, fout_pad), lambda b, i, k: (0, 0)),
            ],
            out_specs=pl.BlockSpec((None, tm, fout_pad),
                                   lambda b, i, k: (b, i, 0)),
            scratch_shapes=[pltpu.VMEM((tm, s_pad), jnp.float32)],
        ),
        compiler_params=pltpu.CompilerParams(
            dimension_semantics=("parallel", "parallel", "arbitrary"),
            vmem_limit_bytes=vmem_limit,
        ),
    )(norm_p, featd, src, adj_p, wu_p, wv_p, bias_p)

    out = out_p[:, :N, :out_feats]
    return out[0] if squeeze_batch else out


# ---------------------------- test scaffolding ------------------------------

def _kaiming_uniform(key, in_feats, out_feats):
    # torch.nn.init.kaiming_uniform_ on a (in_feats, out_feats) tensor:
    # fan_in = size(1) = out_feats, gain = sqrt(2), bound = gain*sqrt(3/fan_in)
    bound = jnp.sqrt(2.0) * jnp.sqrt(3.0 / out_feats)
    return jax.random.uniform(key, (in_feats, out_feats), jnp.float32,
                              minval=-bound, maxval=bound)


def _reference(adj, feat, weight_u, weight_v, bias):
    rst_v = jnp.matmul(feat, weight_v)
    if feat.shape[-1] > weight_u.shape[-1]:
        rst_u = jnp.matmul(adj, jnp.matmul(feat, weight_u))
    else:
        rst_u = jnp.matmul(jnp.matmul(adj, feat), weight_u)
    degs = jnp.maximum(jnp.sum(adj, axis=-1), 1.0)
    norm = (1.0 / degs)[..., None]
    return jax.nn.relu(rst_v + norm * rst_u + bias)


if __name__ == "__main__":
    key = jax.random.PRNGKey(0)
    keys = jax.random.split(key, 9)

    B, N = 4, 16
    IN_FEATS, OUT_FEATS = 8, 32      # in <= out -> aggregate-first branch

    # Deterministic random batch of graphs (dense 0/1 adjacency, no self loops).
    adj = (jax.random.uniform(keys[0], (B, N, N)) < 0.3).astype(jnp.float32)
    adj = adj * (1.0 - jnp.eye(N, dtype=jnp.float32))[None]

    feat = jax.random.normal(keys[1], (B, N, IN_FEATS), dtype=jnp.float32)
    weight_u = _kaiming_uniform(keys[2], IN_FEATS, OUT_FEATS)
    weight_v = _kaiming_uniform(keys[3], IN_FEATS, OUT_FEATS)
    bias = jnp.zeros((OUT_FEATS,), dtype=jnp.float32)

    ref = _reference(adj, feat, weight_u, weight_v, bias)

    # f32 compute path (int8 adjacency is exact): tight correctness check.
    out_f32 = jax.block_until_ready(
        gcn_layer(adj, feat, weight_u, weight_v, bias,
                  compute_dtype=jnp.float32))
    assert out_f32.shape == (B, N, OUT_FEATS)
    assert jnp.allclose(out_f32, ref, atol=1e-4, rtol=1e-4)

    # bf16 compute / int8-adjacency path (default): adjacency 0/1 is exact,
    # feature/weight rounding gives sub-percent error; accumulation stays f32.
    out_bf16 = jax.block_until_ready(
        gcn_layer(adj, feat, weight_u, weight_v, bias))
    assert jnp.allclose(out_bf16, ref, atol=5e-2, rtol=5e-2)

    # Large-in branch (in_feats > out_feats => project-first), unbatched call.
    IN2, OUT2 = 48, 16
    feat2 = jax.random.normal(keys[4], (N, IN2), dtype=jnp.float32)
    wu2 = _kaiming_uniform(keys[5], IN2, OUT2)
    wv2 = _kaiming_uniform(keys[6], IN2, OUT2)
    bias2 = jnp.zeros((OUT2,), dtype=jnp.float32)
    ref2 = _reference(adj[0], feat2, wu2, wv2, bias2)
    out2 = jax.block_until_ready(
        gcn_layer(adj[0], feat2, wu2, wv2, bias2, compute_dtype=jnp.float32))
    assert out2.shape == (N, OUT2)
    assert jnp.allclose(out2, ref2, atol=1e-4, rtol=1e-4)

    # Multi-K-tile reduction path (forced small tiles) with VMEM-resident src.
    N3 = 300
    adj3 = (jax.random.uniform(keys[7], (N3, N3)) < 0.05).astype(jnp.float32)
    adj3 = adj3 * (1.0 - jnp.eye(N3, dtype=jnp.float32))
    feat3 = jax.random.normal(keys[8], (N3, IN_FEATS), dtype=jnp.float32)
    ref3 = _reference(adj3, feat3, weight_u, weight_v, bias)
    out3 = jax.block_until_ready(
        gcn_layer(adj3, feat3, weight_u, weight_v, bias,
                  compute_dtype=jnp.float32, max_row_tile=128, max_k_tile=128))
    assert out3.shape == (N3, OUT_FEATS)
    assert jnp.allclose(out3, ref3, atol=1e-4, rtol=1e-4)

    print("KERNEL_OK")
</pallas_src>

<mosaic_0001>
module attributes {stable_mosaic.version = 11 : i64} {
  func.func @kernel(%arg0: i32, %arg1: i32, %arg2: i32, %arg3: memref<1x128x1xf32, #tpu.memory_space<vmem>>, %arg4: memref<1x128x128xf32, #tpu.memory_space<vmem>>, %arg5: memref<1x128x128xf32, #tpu.memory_space<vmem>>, %arg6: memref<1x128x128xi8, #tpu.memory_space<vmem>>, %arg7: memref<128x128xf32, #tpu.memory_space<vmem>>, %arg8: memref<128x128xf32, #tpu.memory_space<vmem>>, %arg9: memref<1x128xf32, #tpu.memory_space<vmem>>, %arg10: memref<1x128x128xf32, #tpu.memory_space<vmem>>, %arg11: memref<128x128xf32, #tpu.memory_space<vmem>>) attributes {dimension_semantics = [#tpu.dimension_semantics<parallel>, #tpu.dimension_semantics<parallel>, #tpu.dimension_semantics<arbitrary>], iteration_bounds = array<i64: 4, 1, 1>, scalar_prefetch = 0 : i64, scratch_operands = 1 : i64, tpu.core_type = #tpu.core_type<tc>, window_params = [{transform_indices = @transform_0, window_bounds = array<i64: 1, 128, 1>}, {transform_indices = @transform_1, window_bounds = array<i64: 1, 128, 128>}, {transform_indices = @transform_2, window_bounds = array<i64: 1, 128, 128>}, {transform_indices = @transform_3, window_bounds = array<i64: 1, 128, 128>}, {pipeline_mode = #tpu.pipeline_mode<synchronous>, transform_indices = @transform_4, window_bounds = array<i64: 128, 128>}, {pipeline_mode = #tpu.pipeline_mode<synchronous>, transform_indices = @transform_5, window_bounds = array<i64: 128, 128>}, {pipeline_mode = #tpu.pipeline_mode<synchronous>, transform_indices = @transform_6, window_bounds = array<i64: 1, 128>}, {transform_indices = @transform_7, window_bounds = array<i64: 1, 128, 128>}]} {
    %c0_i32 = arith.constant 0 : i32
    %0 = arith.cmpi eq, %arg2, %c0_i32 : i32
    %1 = arith.extui %0 : i1 to i32
    %c0_i32_0 = arith.constant 0 : i32
    %2 = arith.cmpi ne, %1, %c0_i32_0 : i32
    scf.if %2 {
      %cst_11 = arith.constant 0.000000e+00 : f32
      %18 = vector.broadcast %cst_11 : f32 to vector<128x128xf32>
      %c0_12 = arith.constant 0 : index
      %c0_13 = arith.constant 0 : index
      %19 = vector.load %arg11[%c0_12, %c0_13] : memref<128x128xf32, #tpu.memory_space<vmem>>, vector<128x128xf32>
      tpu.vector_store %arg11[%c0_12, %c0_13], %18 {strides = array<i32>} : memref<128x128xf32, #tpu.memory_space<vmem>>, vector<128x128xf32>,
    } else {
    }
    %c128_i32 = arith.constant 128 : i32
    %3 = arith.muli %arg2, %c128_i32 : i32
    %4 = tpu.assume_multiple %3, 128 : i32
    %c0 = arith.constant 0 : index
    %5 = arith.index_cast %4 : i32 to index
    %c0_1 = arith.constant 0 : index
    %6 = vector.load %arg5[%c0, %5, %c0_1] : memref<1x128x128xf32, #tpu.memory_space<vmem>>, vector<1x128x128xf32>
    %7 = vector.shape_cast %6 : vector<1x128x128xf32> to vector<128x128xf32>
    %c0_2 = arith.constant 0 : index
    %c0_3 = arith.constant 0 : index
    %c0_4 = arith.constant 0 : index
    %8 = vector.load %arg6[%c0_2, %c0_3, %c0_4] : memref<1x128x128xi8, #tpu.memory_space<vmem>>, vector<1x128x128xi8>
    %9 = vector.shape_cast %8 : vector<1x128x128xi8> to vector<128x128xi8>
    %10 = arith.sitofp %9 : vector<128x128xi8> to vector<128x128xf32>
    %c0_5 = arith.constant 0 : index
    %c0_6 = arith.constant 0 : index
    %11 = vector.load %arg11[%c0_5, %c0_6] : memref<128x128xf32, #tpu.memory_space<vmem>>, vector<128x128xf32>
    %cst = arith.constant dense<0.000000e+00> : vector<128x128xf32>
    %12 = tpu.matmul %10, %7, %cst {dimension_numbers = #tpu.dot_dimension_numbers<[1], [0], [0], [1], [0, 0, 1, 1], [], []>} : vector<128x128xf32>, vector<128x128xf32>, vector<128x128xf32> -> vector<128x128xf32>
    %13 = arith.addf %11, %12 : vector<128x128xf32>
    %c0_7 = arith.constant 0 : index
    %c0_8 = arith.constant 0 : index
    %14 = vector.load %arg11[%c0_7, %c0_8] : memref<128x128xf32, #tpu.memory_space<vmem>>, vector<128x128xf32>
    tpu.vector_store %arg11[%c0_7, %c0_8], %13 {strides = array<i32>} : memref<128x128xf32, #tpu.memory_space<vmem>>, vector<128x128xf32>,
    %c0_i32_9 = arith.constant 0 : i32
    %15 = arith.cmpi eq, %arg2, %c0_i32_9 : i32
    %16 = arith.extui %15 : i1 to i32
    %c0_i32_10 = arith.constant 0 : i32
    %17 = arith.cmpi ne, %16, %c0_i32_10 : i32
    scf.if %17 {
      %c0_11 = arith.constant 0 : index
      %c0_12 = arith.constant 0 : index
      %18 = vector.load %arg11[%c0_11, %c0_12] : memref<128x128xf32, #tpu.memory_space<vmem>>, vector<128x128xf32>
      %c0_13 = arith.constant 0 : index
      %c0_14 = arith.constant 0 : index
      %19 = vector.load %arg7[%c0_13, %c0_14] : memref<128x128xf32, #tpu.memory_space<vmem>>, vector<128x128xf32>
      %cst_15 = arith.constant dense<0.000000e+00> : vector<128x128xf32>
      %20 = tpu.matmul %18, %19, %cst_15 {dimension_numbers = #tpu.dot_dimension_numbers<[1], [0], [0], [1], [0, 0, 1, 1], [], []>} : vector<128x128xf32>, vector<128x128xf32>, vector<128x128xf32> -> vector<128x128xf32>
      %c0_16 = arith.constant 0 : index
      %c0_17 = arith.constant 0 : index
      %c0_18 = arith.constant 0 : index
      %21 = vector.load %arg4[%c0_16, %c0_17, %c0_18] : memref<1x128x128xf32, #tpu.memory_space<vmem>>, vector<1x128x128xf32>
      %22 = vector.shape_cast %21 : vector<1x128x128xf32> to vector<128x128xf32>
      %c0_19 = arith.constant 0 : index
      %c0_20 = arith.constant 0 : index
      %23 = vector.load %arg8[%c0_19, %c0_20] : memref<128x128xf32, #tpu.memory_space<vmem>>, vector<128x128xf32>
      %cst_21 = arith.constant dense<0.000000e+00> : vector<128x128xf32>
      %24 = tpu.matmul %22, %23, %cst_21 {dimension_numbers = #tpu.dot_dimension_numbers<[1], [0], [0], [1], [0, 0, 1, 1], [], []>} : vector<128x128xf32>, vector<128x128xf32>, vector<128x128xf32> -> vector<128x128xf32>
      %c0_22 = arith.constant 0 : index
      %c0_23 = arith.constant 0 : index
      %c0_24 = arith.constant 0 : index
      %25 = vector.load %arg3[%c0_22, %c0_23, %c0_24] : memref<1x128x1xf32, #tpu.memory_space<vmem>>, vector<1x128x1xf32>
      %26 = vector.shape_cast %25 : vector<1x128x1xf32> to vector<128x1xf32>
      %27 = vector.broadcast %26 : vector<128x1xf32> to vector<128x128xf32>
      %28 = arith.mulf %27, %20 : vector<128x128xf32>
      %29 = arith.addf %24, %28 : vector<128x128xf32>
      %c0_25 = arith.constant 0 : index
      %c0_26 = arith.constant 0 : index
      %30 = vector.load %arg9[%c0_25, %c0_26] : memref<1x128xf32, #tpu.memory_space<vmem>>, vector<1x128xf32>
      %31 = vector.broadcast %30 : vector<1x128xf32> to vector<128x128xf32>
      %32 = arith.addf %29, %31 : vector<128x128xf32>
      %cst_27 = arith.constant 0.000000e+00 : f32
      %33 = vector.broadcast %cst_27 : f32 to vector<128x128xf32>
      %34 = arith.maximumf %32, %33 : vector<128x128xf32>
      %c0_28 = arith.constant 0 : index
      %c0_29 = arith.constant 0 : index
      %c0_30 = arith.constant 0 : index
      %35 = vector.load %arg10[%c0_28, %c0_29, %c0_30] : memref<1x128x128xf32, #tpu.memory_space<vmem>>, vector<1x128x128xf32>
      %36 = vector.shape_cast %35 : vector<1x128x128xf32> to vector<128x128xf32>
      %37 = vector.shape_cast %34 : vector<128x128xf32> to vector<1x128x128xf32>
      tpu.vector_store %arg10[%c0_28, %c0_29, %c0_30], %37 {strides = array<i32>} : memref<1x128x128xf32, #tpu.memory_space<vmem>>, vector<1x128x128xf32>,
    } else {
    }
    return
  }
  func.func @transform_0(%arg0: i32, %arg1: i32, %arg2: i32) -> (i32, i32, i32) {
    %c0_i32 = arith.constant 0 : i32
    %c0_i32_0 = arith.constant 0 : i32
    return %arg0, %arg1, %c0_i32 : i32, i32, i32
  }
  func.func @transform_1(%arg0: i32, %arg1: i32, %arg2: i32) -> (i32, i32, i32) {
    %c0_i32 = arith.constant 0 : i32
    %c0_i32_0 = arith.constant 0 : i32
    return %arg0, %arg1, %c0_i32 : i32, i32, i32
  }
  func.func @transform_2(%arg0: i32, %arg1: i32, %arg2: i32) -> (i32, i32, i32) {
    %c0_i32 = arith.constant 0 : i32
    %c0_i32_0 = arith.constant 0 : i32
    %c0_i32_1 = arith.constant 0 : i32
    return %arg0, %c0_i32, %c0_i32_0 : i32, i32, i32
  }
  func.func @transform_3(%arg0: i32, %arg1: i32, %arg2: i32) -> (i32, i32, i32) {
    %c0_i32 = arith.constant 0 : i32
    return %arg0, %arg1, %arg2 : i32, i32, i32
  }
  func.func @transform_4(%arg0: i32, %arg1: i32, %arg2: i32) -> (i32, i32) {
    %c0_i32 = arith.constant 0 : i32
    %c0_i32_0 = arith.constant 0 : i32
    %c0_i32_1 = arith.constant 0 : i32
    return %c0_i32, %c0_i32_0 : i32, i32
  }
  func.func @transform_5(%arg0: i32, %arg1: i32, %arg2: i32) -> (i32, i32) {
    %c0_i32 = arith.constant 0 : i32
    %c0_i32_0 = arith.constant 0 : i32
    %c0_i32_1 = arith.constant 0 : i32
    return %c0_i32, %c0_i32_0 : i32, i32
  }
  func.func @transform_6(%arg0: i32, %arg1: i32, %arg2: i32) -> (i32, i32) {
    %c0_i32 = arith.constant 0 : i32
    %c0_i32_0 = arith.constant 0 : i32
    %c0_i32_1 = arith.constant 0 : i32
    return %c0_i32, %c0_i32_0 : i32, i32
  }
  func.func @transform_7(%arg0: i32, %arg1: i32, %arg2: i32) -> (i32, i32, i32) {
    %c0_i32 = arith.constant 0 : i32
    %c0_i32_0 = arith.constant 0 : i32
    return %arg0, %arg1, %c0_i32 : i32, i32, i32
  }
}

</mosaic_0001>

<llo_original>
// kernel: tpu_custom_call.1
$region0: #{tpu_custom_call.1}
  #allocation0 [shape = 'u32[]', space=smem, size = 0x4, offset = 0x4, fixed_abs, tag = 'smem constant byte address 0x4 - core index']
  #allocation1 [shape = 'u32[144,128]{1,0:T(1,128)}', space=vmem, size = 0x12000, scoped, tag = 'internal scratch']
  #allocation2 [shape = 'f32[128,128]{1,0:T(8,128)}', space=vmem, size = 0x10000, scoped, tag = 'scratch operand']
  %s0 = inlined_call_operand.vmem [shape: f32[4,128,1], index: 0, kind: input, shape index: {}]
  %s1 = inlined_call_operand.vmem [shape: f32[4,128,128], index: 1, kind: input, shape index: {}]
  %s2 = inlined_call_operand.hbm [shape: f32[4,128,128], index: 2, kind: input, shape index: {}]
  %s3 = inlined_call_operand.hbm [shape: s8[4,128,128], index: 3, kind: input, shape index: {}]
  %s4 = inlined_call_operand.hbm [shape: f32[128,128], index: 4, kind: input, shape index: {}]
  %s5 = inlined_call_operand.hbm [shape: f32[128,128], index: 5, kind: input, shape index: {}]
  %s6 = inlined_call_operand.vmem [shape: f32[1,128], index: 6, kind: input, shape index: {}]
  %s7 = inlined_call_operand.hbm [shape: f32[4,128,128], index: 7, kind: output, shape index: {}]
  %s8 = sld [smem:[#allocation0]]
  $region85: #{tpu_custom_call.1} parent=0
    _
  %s10 = ssub.s32 1, %s8
  %s11 = scalar_select 0, %s10, %s8
  $region1: #{tpu_custom_call.1} parent=0
    #allocation3 [shape = 'u8[131072]{0}', space=vmem, size = 0x20000, scoped, tag = 'input window, operand 2']
    #allocation4 [shape = 's32[2]{0}', space=sflag, size = 0x8, scoped, tag = 'scoped memory for tpu_custom_call.1']
    #allocation5 [shape = 's32[2]{0}', space=sflag, size = 0x8, scoped, tag = 'scoped memory for tpu_custom_call.1']
    #allocation6 [shape = 'u8[32768]{0}', space=vmem, size = 0x8000, scoped, tag = 'input window, operand 3']
    #allocation7 [shape = 's32[2]{0}', space=sflag, size = 0x8, scoped, tag = 'scoped memory for tpu_custom_call.1']
    #allocation8 [shape = 'u8[65536]{0}', space=vmem, size = 0x10000, scoped, tag = 'input window, operand 4, single buffered']
    #allocation9 [shape = 'u8[65536]{0}', space=vmem, size = 0x10000, scoped, tag = 'input window, operand 5, single buffered']
    #allocation10 [shape = 's32[1]{0}', space=sflag, size = 0x4, scoped, tag = 'scoped memory for tpu_custom_call.1']
    #allocation11 [shape = 'u8[131072]{0}', space=vmem, size = 0x20000, scoped, tag = 'output window, operand 0']
    %12 = vsyncpa [#allocation4], 0
    %s13 = scalar_lea.sflag [#allocation4], 1
    %14 = vsyncpa %s13, 0
    %15 = vsyncpa [#allocation7], 0
    %s16 = scalar_lea.sflag [#allocation7], 1
    %17 = vsyncpa %s16, 0
    %18 = vsyncpa [#allocation10], 0
    %19 = vsyncpa [#allocation5], 0
    %s20 = scalar_lea.sflag [#allocation5], 1
    %21 = vsyncpa %s20, 0
    loop: start=0, step=1, limit=6
    $region2: #{tpu_custom_call.1} parent=1 // loop_pre_header
      _
    $region3: #{tpu_custom_call.1} parent=1 // loop_header
      %s23 = sphi 0, %s27
      %p24 = scmp.ge.s32.totalorder %s23, 6
      %s30 = sphi 0, %s49
      %s31 = sphi 0, %s45
      %s32 = sphi 0, %s41
      %s33 = sphi 0, %s30
      %s34 = sphi 0, %s31
      %s35 = sphi 0, %s32
      %s36 = sphi 0, %s33
      %s37 = sphi 0, %s34
      %s38 = sphi 0, %s35
      %s54 = sphi 0, %s56
      %s57 = sphi 0, %s54
      %s58 = sphi 0, %s57
      %s74 = sphi 0, %s58
      %s82 = sphi 0, %s84
      %s85 = sphi 0, %s82
      %s86 = sphi 0, %s85
      %s102 = sphi 0, %s86
      %s108 = sphi 0, %s110
      %s111 = sphi 0, %s108
      %s112 = sphi 0, %s111
      %s128 = sphi 0, %s112
      %s138 = sphi 0, %s140
      %s141 = sphi 0, %s138
      %s142 = sphi 0, %s141
      %s158 = sphi 0, %s142
      %s162 = sphi 0, %s162
      %s164 = sphi 0, %s162
      %s165 = sphi 0, %s164
      %s179 = sphi 0, %s165
      %s183 = sphi 0, %s183
      %s185 = sphi 0, %s183
      %s186 = sphi 0, %s185
      %s200 = sphi 0, %s186
      %s204 = sphi 0, %s204
      %s206 = sphi 0, %s204
      %s207 = sphi 0, %s206
      %s221 = sphi 0, %s207
      %s229 = sphi 0, %s231
      %s232 = sphi 0, %s229
      %s233 = sphi 0, %s232
      %s249 = sphi 0, %s233
    $region4: #{tpu_custom_call.1} parent=1 // loop_header_branch
      %26 = sbr.rel (%p24) target = $region8
    $region5: #{tpu_custom_call.1} parent=1 // loop_body
      %s28 = ssub.s32 %s23, 1
      %s29 = ssub.s32 %s23, 2
      %s39 = sadd.s32 1, %s32
      %p40 = scmp.ge.s32.totalorder %s39, 1
      %s41 = scalar_select %p40, 0, %s39
      %s42 = sadd.s32 1, %s31
      %s43 = scalar_select %p40, %s42, %s31
      %p44 = scmp.ge.s32.totalorder %s43, 1
      %s45 = scalar_select %p44, 0, %s43
      %s46 = sadd.s32 1, %s30
      %s47 = scalar_select %p44, %s46, %s30
      %p48 = scmp.ge.s32.totalorder %s47, 4
      %s49 = scalar_select %p48, 0, %s47
      %s50 = ssub.s32 %s30, %s49
      %s51 = ssub.s32 %s31, %s45
      %s52 = sor.u32 %s50, %s51
      %p53 = scmp.eq.s32.totalorder %s52, 0
      %s55 = sadd.s32 %s54, 1
      %s56 = scalar_select %p53, %s54, %s55
      %p59 = pneg %p53
      %p60 = scmp.eq.s32.totalorder %s23, 3
      %p61 = por %p59, %p60
      %p62 = scmp.ne.s32.totalorder %s54, %s57
      %p63 = scmp.eq.s32.totalorder %s23, 0
      %p64 = por %p62, %p63
      %p65 = scmp.ne.s32.totalorder %s54, %s57
      %p66 = scmp.eq.s32.totalorder %s28, 3
      %p67 = por %p65, %p66
      %p68 = scmp.ne.s32.totalorder %s57, %s58
      %p69 = scmp.eq.s32.totalorder %s28, 0
      %p70 = por %p68, %p69
      %p71 = scmp.ne.s32.totalorder %s57, %s58
      %p72 = scmp.eq.s32.totalorder %s29, 3
      %p73 = por %p71, %p72
      %p75 = scmp.ne.s32.totalorder %s58, %s74
      %p76 = scmp.eq.s32.totalorder %s29, 0
      %p77 = por %p75, %p76
      %s78 = ssub.s32 %s30, %s49
      %s79 = ssub.s32 %s31, %s45
      %s80 = sor.u32 %s78, %s79
      %p81 = scmp.eq.s32.totalorder %s80, 0
      %s83 = sadd.s32 %s82, 1
      %s84 = scalar_select %p81, %s82, %s83
      %p87 = pneg %p81
      %p88 = scmp.eq.s32.totalorder %s23, 3
      %p89 = por %p87, %p88
      %p90 = scmp.ne.s32.totalorder %s82, %s85
      %p91 = scmp.eq.s32.totalorder %s23, 0
      %p92 = por %p90, %p91
      %p93 = scmp.ne.s32.totalorder %s82, %s85
      %p94 = scmp.eq.s32.totalorder %s28, 3
      %p95 = por %p93, %p94
      %p96 = scmp.ne.s32.totalorder %s85, %s86
      %p97 = scmp.eq.s32.totalorder %s28, 0
      %p98 = por %p96, %p97
      %p99 = scmp.ne.s32.totalorder %s85, %s86
      %p100 = scmp.eq.s32.totalorder %s29, 3
      %p101 = por %p99, %p100
      %p103 = scmp.ne.s32.totalorder %s86, %s102
      %p104 = scmp.eq.s32.totalorder %s29, 0
      %p105 = por %p103, %p104
      %s106 = ssub.s32 %s30, %s49
      %p107 = scmp.eq.s32.totalorder %s106, 0
      %s109 = sadd.s32 %s108, 1
      %s110 = scalar_select %p107, %s108, %s109
      %p113 = pneg %p107
      %p114 = scmp.eq.s32.totalorder %s23, 3
      %p115 = por %p113, %p114
      %p116 = scmp.ne.s32.totalorder %s108, %s111
      %p117 = scmp.eq.s32.totalorder %s23, 0
      %p118 = por %p116, %p117
      %p119 = scmp.ne.s32.totalorder %s108, %s111
      %p120 = scmp.eq.s32.totalorder %s28, 3
      %p121 = por %p119, %p120
      %p122 = scmp.ne.s32.totalorder %s111, %s112
      %p123 = scmp.eq.s32.totalorder %s28, 0
      %p124 = por %p122, %p123
      %p125 = scmp.ne.s32.totalorder %s111, %s112
      %p126 = scmp.eq.s32.totalorder %s29, 3
      %p127 = por %p125, %p126
      %p129 = scmp.ne.s32.totalorder %s112, %s128
      %p130 = scmp.eq.s32.totalorder %s29, 0
      %p131 = por %p129, %p130
      %s132 = ssub.s32 %s30, %s49
      %s133 = ssub.s32 %s31, %s45
      %s134 = sor.u32 %s132, %s133
      %s135 = ssub.s32 %s32, %s41
      %s136 = sor.u32 %s134, %s135
      %p137 = scmp.eq.s32.totalorder %s136, 0
      %s139 = sadd.s32 %s138, 1
      %s140 = scalar_select %p137, %s138, %s139
      %p143 = pneg %p137
      %p144 = scmp.eq.s32.totalorder %s23, 3
      %p145 = por %p143, %p144
      %p146 = scmp.ne.s32.totalorder %s138, %s141
      %p147 = scmp.eq.s32.totalorder %s23, 0
      %p148 = por %p146, %p147
      %p149 = scmp.ne.s32.totalorder %s138, %s141
      %p150 = scmp.eq.s32.totalorder %s28, 3
      %p151 = por %p149, %p150
      %p152 = scmp.ne.s32.totalorder %s141, %s142
      %p153 = scmp.eq.s32.totalorder %s28, 0
      %p154 = por %p152, %p153
      %p155 = scmp.ne.s32.totalorder %s141, %s142
      %p156 = scmp.eq.s32.totalorder %s29, 3
      %p157 = por %p155, %p156
      %p159 = scmp.ne.s32.totalorder %s142, %s158
      %p160 = scmp.eq.s32.totalorder %s29, 0
      %p161 = por %p159, %p160
      %s163 = sadd.s32 %s162, 1
      %p166 = scmp.eq.s32.totalorder %s23, 3
      %p167 = scmp.ne.s32.totalorder %s162, %s164
      %p168 = scmp.eq.s32.totalorder %s23, 0
      %p169 = por %p167, %p168
      %p170 = scmp.ne.s32.totalorder %s162, %s164
      %p171 = scmp.eq.s32.totalorder %s28, 3
      %p172 = por %p170, %p171
      %p173 = scmp.ne.s32.totalorder %s164, %s165
      %p174 = scmp.eq.s32.totalorder %s28, 0
      %p175 = por %p173, %p174
      %p176 = scmp.ne.s32.totalorder %s164, %s165
      %p177 = scmp.eq.s32.totalorder %s29, 3
      %p178 = por %p176, %p177
      %p180 = scmp.ne.s32.totalorder %s165, %s179
      %p181 = scmp.eq.s32.totalorder %s29, 0
      %p182 = por %p180, %p181
      %s184 = sadd.s32 %s183, 1
      %p187 = scmp.eq.s32.totalorder %s23, 3
      %p188 = scmp.ne.s32.totalorder %s183, %s185
      %p189 = scmp.eq.s32.totalorder %s23, 0
      %p190 = por %p188, %p189
      %p191 = scmp.ne.s32.totalorder %s183, %s185
      %p192 = scmp.eq.s32.totalorder %s28, 3
      %p193 = por %p191, %p192
      %p194 = scmp.ne.s32.totalorder %s185, %s186
      %p195 = scmp.eq.s32.totalorder %s28, 0
      %p196 = por %p194, %p195
      %p197 = scmp.ne.s32.totalorder %s185, %s186
      %p198 = scmp.eq.s32.totalorder %s29, 3
      %p199 = por %p197, %p198
      %p201 = scmp.ne.s32.totalorder %s186, %s200
      %p202 = scmp.eq.s32.totalorder %s29, 0
      %p203 = por %p201, %p202
      %s205 = sadd.s32 %s204, 1
      %p208 = scmp.eq.s32.totalorder %s23, 3
      %p209 = scmp.ne.s32.totalorder %s204, %s206
      %p210 = scmp.eq.s32.totalorder %s23, 0
      %p211 = por %p209, %p210
      %p212 = scmp.ne.s32.totalorder %s204, %s206
      %p213 = scmp.eq.s32.totalorder %s28, 3
      %p214 = por %p212, %p213
      %p215 = scmp.ne.s32.totalorder %s206, %s207
      %p216 = scmp.eq.s32.totalorder %s28, 0
      %p217 = por %p215, %p216
      %p218 = scmp.ne.s32.totalorder %s206, %s207
      %p219 = scmp.eq.s32.totalorder %s29, 3
      %p220 = por %p218, %p219
      %p222 = scmp.ne.s32.totalorder %s207, %s221
      %p223 = scmp.eq.s32.totalorder %s29, 0
      %p224 = por %p222, %p223
      %s225 = ssub.s32 %s30, %s49
      %s226 = ssub.s32 %s31, %s45
      %s227 = sor.u32 %s225, %s226
      %p228 = scmp.eq.s32.totalorder %s227, 0
      %s230 = sadd.s32 %s229, 1
      %s231 = scalar_select %p228, %s229, %s230
      %p234 = pneg %p228
      %p235 = scmp.eq.s32.totalorder %s23, 3
      %p236 = por %p234, %p235
      %p237 = scmp.ne.s32.totalorder %s229, %s232
      %p238 = scmp.eq.s32.totalorder %s23, 0
      %p239 = por %p237, %p238
      %p240 = scmp.ne.s32.totalorder %s229, %s232
      %p241 = scmp.eq.s32.totalorder %s28, 3
      %p242 = por %p240, %p241
      %p243 = scmp.ne.s32.totalorder %s232, %s233
      %p244 = scmp.eq.s32.totalorder %s28, 0
      %p245 = por %p243, %p244
      %p246 = scmp.ne.s32.totalorder %s232, %s233
      %p247 = scmp.eq.s32.totalorder %s29, 3
      %p248 = por %p246, %p247
      %p250 = scmp.ne.s32.totalorder %s233, %s249
      %p251 = scmp.eq.s32.totalorder %s29, 0
      %p252 = por %p250, %p251
      %p253 = scmp.le.s32.totalorder 1, %s23
      %p254 = scmp.lt.s32.totalorder %s23, 5
      %p255 = pnand %p253, %p254
      %p256 = pneg %p255
      // Predicated region
      $region9: #{tpu_custom_call.1} parent=5 // pred_check
        _
      $region10: #{tpu_custom_call.1} parent=5 // pred_check_branch
        %258 = sbr.rel (%p255) target = $region12
      $region11: #{tpu_custom_call.1} parent=5 // pred_region
        %s259 = ssub.s32 %s23, 1
        // Predicated region
        $region13: #{tpu_custom_call.1} parent=11 // pred_check
          %p260 = pneg %p175
        $region14: #{tpu_custom_call.1} parent=11 // pred_check_branch
          %262 = sbr.rel (%p260) target = $region16
        $region15: #{tpu_custom_call.1} parent=11 // pred_region
          %s264 = ssub.s32 2048, 2048
          %265 = vsyncadd [#allocation7], %s264
          %s266 = sshll.u32 [#allocation8], 4
          %s267 = int_to_ptr.vmem [resolvable:$true] %s266
          %272 = dma.hbm_to_vmem [thread:$0]  %s4, 2048, %s267, [#allocation7], 128, 128, 8
        $region16: #{tpu_custom_call.1} parent=11 // pred_fallthru
          _
        // Predicated region
        $region17: #{tpu_custom_call.1} parent=11 // pred_check
          %p273 = pneg %p196
        $region18: #{tpu_custom_call.1} parent=11 // pred_check_branch
          %275 = sbr.rel (%p273) target = $region20
        $region19: #{tpu_custom_call.1} parent=11 // pred_region
          %s277 = ssub.s32 2048, 2048
          %278 = vsyncadd [#allocation10], %s277
          %s279 = sshll.u32 [#allocation9], 4
          %s280 = int_to_ptr.vmem [resolvable:$true] %s279
          %285 = dma.hbm_to_vmem [thread:$0]  %s5, 2048, %s280, [#allocation10], 128, 128, 8
        $region20: #{tpu_custom_call.1} parent=11 // pred_fallthru
          _
        // Predicated region
        $region21: #{tpu_custom_call.1} parent=11 // pred_check
          %p286 = pneg %p217
        $region22: #{tpu_custom_call.1} parent=11 // pred_check_branch
          %288 = sbr.rel (%p286) target = $region24
        $region23: #{tpu_custom_call.1} parent=11 // pred_region
          _
        $region24: #{tpu_custom_call.1} parent=11 // pred_fallthru
          _
      $region12: #{tpu_custom_call.1} parent=5 // pred_fallthru
        _
      %p289 = scmp.lt.s32.totalorder %s23, 4
      // Predicated region
      $region25: #{tpu_custom_call.1} parent=5 // pred_check
        %p290 = pneg %p289
      $region26: #{tpu_custom_call.1} parent=5 // pred_check_branch
        %292 = sbr.rel (%p290) target = $region28
      $region27: #{tpu_custom_call.1} parent=5 // pred_region
        // Predicated region
        $region29: #{tpu_custom_call.1} parent=27 // pred_check
          %p293 = pneg %p64
        $region30: #{tpu_custom_call.1} parent=27 // pred_check_branch
          %295 = sbr.rel (%p293) target = $region32
        $region31: #{tpu_custom_call.1} parent=27 // pred_region
          %s296 = smul.u32 16, %s31
          %p297 = scmp.lt.s32.totalorder %s30, 3
          %s298 = scalar_select %p297, %s30, 3
          %p299 = scmp.lt.s32.totalorder %s296, 15
          %s300 = scalar_select %p299, %s296, 15
          %s301 = smul.addr %s298, 16
          %s302 = sadd.s32 %s300, %s301
          %s303 = smul.addr %s302, 8
          %s304 = scalar_lea.vmem %s0, %s303
          %s305 = smul.u32 16, %s31
        $region32: #{tpu_custom_call.1} parent=27 // pred_fallthru
          _
        // Predicated region
        $region33: #{tpu_custom_call.1} parent=27 // pred_check
          %p306 = pneg %p92
        $region34: #{tpu_custom_call.1} parent=27 // pred_check_branch
          %308 = sbr.rel (%p306) target = $region36
        $region35: #{tpu_custom_call.1} parent=27 // pred_region
          %s309 = smul.u32 16, %s31
          %p310 = scmp.lt.s32.totalorder %s30, 3
          %s311 = scalar_select %p310, %s30, 3
          %p312 = scmp.lt.s32.totalorder %s309, 15
          %s313 = scalar_select %p312, %s309, 15
          %s314 = smul.addr %s311, 16
          %s315 = sadd.s32 %s313, %s314
          %s316 = smul.addr %s315, 8
          %s317 = scalar_lea.vmem %s1, %s316
          %s318 = smul.u32 16, %s31
        $region36: #{tpu_custom_call.1} parent=27 // pred_fallthru
          _
        // Predicated region
        $region37: #{tpu_custom_call.1} parent=27 // pred_check
          %p319 = pneg %p118
        $region38: #{tpu_custom_call.1} parent=27 // pred_check_branch
          %321 = sbr.rel (%p319) target = $region40
        $region39: #{tpu_custom_call.1} parent=27 // pred_region
          %s322 = sand.u32 %s108, 1
          %s323 = scalar_lea.sflag [#allocation4], %s322
          %s324 = sand.u32 %s108, 1
          %s325 = smul.addr %s324, 128
          %s326 = scalar_lea.vmem [#allocation3], %s325
          %s328 = ssub.s32 2048, 2048
          %329 = vsyncadd %s323, %s328
          %s330 = smul.addr %s30, 16
          %s331 = smul.addr %s330, 128
          %s332 = scalar_lea.hbm %s2, %s331
          %s333 = sshll.u32 %s326, 4
          %s334 = int_to_ptr.vmem [resolvable:$true] %s333
          %339 = dma.hbm_to_vmem [thread:$0]  %s332, 2048, %s334, %s323, 128, 128, 8
        $region40: #{tpu_custom_call.1} parent=27 // pred_fallthru
          _
        // Predicated region
        $region41: #{tpu_custom_call.1} parent=27 // pred_check
          %p340 = pneg %p148
        $region42: #{tpu_custom_call.1} parent=27 // pred_check_branch
          %342 = sbr.rel (%p340) target = $region44
        $region43: #{tpu_custom_call.1} parent=27 // pred_region
          %s343 = sand.u32 %s23, 1
          %s344 = scalar_lea.sflag [#allocation7], %s343
          %s345 = sand.u32 %s138, 1
          %s346 = smul.addr %s345, 32
          %s347 = scalar_lea.vmem [#allocation6], %s346
          %s348 = smul.u32 4, %s31
          %s350 = ssub.s32 512, 512
          %351 = vsyncadd %s344, %s350
          %s352 = sadd.s32 %s32, %s348
          %s353 = smul.addr %s30, 4
          %s354 = sadd.s32 %s352, %s353
          %s355 = smul.addr %s354, 128
          %s356 = scalar_lea.hbm %s3, %s355
          %s357 = sshll.u32 %s347, 4
          %s358 = int_to_ptr.vmem [resolvable:$true] %s357
          %363 = dma.hbm_to_vmem [thread:$0]  %s356, 512, %s358, %s344, 128, 128, 8
        $region44: #{tpu_custom_call.1} parent=27 // pred_fallthru
          _
      $region28: #{tpu_custom_call.1} parent=5 // pred_fallthru
        _
      %p364 = scmp.le.s32.totalorder 1, %s23
      %p365 = scmp.lt.s32.totalorder %s23, 5
      %p366 = pnand %p364, %p365
      %p367 = pneg %p366
      // Predicated region
      $region45: #{tpu_custom_call.1} parent=5 // pred_check
        _
      $region46: #{tpu_custom_call.1} parent=5 // pred_check_branch
        %369 = sbr.rel (%p366) target = $region48
      $region47: #{tpu_custom_call.1} parent=5 // pred_region
        %s370 = ssub.s32 %s23, 1
        %s371 = sand.u32 %s111, 1
        %s372 = scalar_lea.sflag [#allocation4], %s371
        %s373 = sand.u32 %s111, 1
        %s374 = smul.addr %s373, 128
        %s375 = scalar_lea.vmem [#allocation3], %s374
        // Predicated region
        $region49: #{tpu_custom_call.1} parent=47 // pred_check
          %p376 = pneg %p124
        $region50: #{tpu_custom_call.1} parent=47 // pred_check_branch
          %378 = sbr.rel (%p376) target = $region52
        $region51: #{tpu_custom_call.1} parent=47 // pred_region
          %379 = dma.done %s372, 2048
        $region52: #{tpu_custom_call.1} parent=47 // pred_fallthru
          _
        %s380 = sand.u32 %s28, 1
        %s381 = scalar_lea.sflag [#allocation7], %s380
        %s382 = sand.u32 %s141, 1
        %s383 = smul.addr %s382, 32
        %s384 = scalar_lea.vmem [#allocation6], %s383
        // Predicated region
        $region53: #{tpu_custom_call.1} parent=47 // pred_check
          %p385 = pneg %p154
        $region54: #{tpu_custom_call.1} parent=47 // pred_check_branch
          %387 = sbr.rel (%p385) target = $region56
        $region55: #{tpu_custom_call.1} parent=47 // pred_region
          %388 = dma.done %s381, 512
        $region56: #{tpu_custom_call.1} parent=47 // pred_fallthru
          _
        // Predicated region
        $region57: #{tpu_custom_call.1} parent=47 // pred_check
          %p389 = pneg %p175
        $region58: #{tpu_custom_call.1} parent=47 // pred_check_branch
          %391 = sbr.rel (%p389) target = $region60
        $region59: #{tpu_custom_call.1} parent=47 // pred_region
          %392 = dma.done [#allocation7], 2048
        $region60: #{tpu_custom_call.1} parent=47 // pred_fallthru
          _
        // Predicated region
        $region61: #{tpu_custom_call.1} parent=47 // pred_check
          %p393 = pneg %p196
        $region62: #{tpu_custom_call.1} parent=47 // pred_check_branch
          %395 = sbr.rel (%p393) target = $region64
        $region63: #{tpu_custom_call.1} parent=47 // pred_region
          %396 = dma.done [#allocation10], 2048
        $region64: #{tpu_custom_call.1} parent=47 // pred_fallthru
          _
        %s397 = smul.u32 16, %s34
        %p398 = scmp.lt.s32.totalorder %s33, 3
        %s399 = scalar_select %p398, %s33, 3
        %p400 = scmp.lt.s32.totalorder %s397, 15
        %s401 = scalar_select %p400, %s397, 15
        %s402 = smul.addr %s399, 16
        %s403 = sadd.s32 %s401, %s402
        %s404 = smul.addr %s403, 8
        %s405 = scalar_lea.vmem %s0, %s404
        %p406 = pneg %p70
        %p407 = pneg %p67
        %s408 = smul.u32 16, %s34
        %p409 = scmp.lt.s32.totalorder %s33, 3
        %s410 = scalar_select %p409, %s33, 3
        %p411 = scmp.lt.s32.totalorder %s408, 15
        %s412 = scalar_select %p411, %s408, 15
        %s413 = smul.addr %s410, 16
        %s414 = sadd.s32 %s412, %s413
        %s415 = smul.addr %s414, 8
        %s416 = scalar_lea.vmem %s1, %s415
        %p417 = pneg %p98
        %p418 = pneg %p95
        %s419 = sand.u32 %s111, 1
        %s420 = scalar_lea.sflag [#allocation4], %s419
        %s421 = sand.u32 %s111, 1
        %s422 = smul.addr %s421, 128
        %s423 = scalar_lea.vmem [#allocation3], %s422
        %p424 = pneg %p124
        %p425 = pneg %p121
        %s426 = sand.u32 %s28, 1
        %s427 = scalar_lea.sflag [#allocation7], %s426
        %s428 = sand.u32 %s141, 1
        %s429 = smul.addr %s428, 32
        %s430 = scalar_lea.vmem [#allocation6], %s429
        %p431 = pneg %p154
        %p432 = pneg %p151
        %p433 = pneg %p175
        %p434 = pneg %p172
        %p435 = pneg %p196
        %p436 = pneg %p193
        %p437 = pneg %p217
        %p438 = pneg %p214
        %p439 = pneg %p245
        %p440 = pneg %p242
        %s441 = sand.u32 %s232, 1
        %s442 = scalar_lea.sflag [#allocation5], %s441
        %s443 = sand.u32 %s232, 1
        %s444 = smul.addr %s443, 128
        %s445 = scalar_lea.vmem [#allocation11], %s444
        %s446 = smul.u32 16, %s34
        %p447 = scmp.lt.s32.totalorder %s33, 3
        %s448 = scalar_select %p447, %s33, 3
        %p449 = scmp.lt.s32.totalorder %s446, 15
        %s450 = scalar_select %p449, %s446, 15
        %s451 = smul.addr %s448, 16
        %s452 = sadd.s32 %s450, %s451
        %s453 = smul.addr %s452, 8
        %s454 = scalar_lea.vmem %s0, %s453
        %s455 = smul.u32 16, %s34
        %s456 = smul.u32 16, %s34
        %p457 = scmp.lt.s32.totalorder %s33, 3
        %s458 = scalar_select %p457, %s33, 3
        %p459 = scmp.lt.s32.totalorder %s456, 15
        %s460 = scalar_select %p459, %s456, 15
        %s461 = smul.addr %s458, 16
        %s462 = sadd.s32 %s460, %s461
        %s463 = smul.addr %s462, 8
        %s464 = scalar_lea.vmem %s1, %s463
        %s465 = smul.u32 16, %s34
        %s466 = smul.u32 4, %s34
        %s467 = smul.u32 16, %s34
        %p468 = scmp.eq.s32.totalorder %s35, 0
        // Predicated region
        $region65: #{tpu_custom_call.1} parent=47 // pred_check
          %p469 = pneg %p468
        $region66: #{tpu_custom_call.1} parent=47 // pred_check_branch
          %471 = sbr.rel (%p469) target = $region68
        $region67: #{tpu_custom_call.1} parent=47 // pred_region
          %472 = vst [vmem:[#allocation2] sm:$0xff] 0.0
          %473 = vst [vmem:[#allocation2 + $0x8] sm:$0xff] 0.0
          %474 = vst [vmem:[#allocation2 + $0x10] sm:$0xff] 0.0
          %475 = vst [vmem:[#allocation2 + $0x18] sm:$0xff] 0.0
          %476 = vst [vmem:[#allocation2 + $0x20] sm:$0xff] 0.0
          %477 = vst [vmem:[#allocation2 + $0x28] sm:$0xff] 0.0
          %478 = vst [vmem:[#allocation2 + $0x30] sm:$0xff] 0.0
          %479 = vst [vmem:[#allocation2 + $0x38] sm:$0xff] 0.0
          %480 = vst [vmem:[#allocation2 + $0x40] sm:$0xff] 0.0
          %481 = vst [vmem:[#allocation2 + $0x48] sm:$0xff] 0.0
          %482 = vst [vmem:[#allocation2 + $0x50] sm:$0xff] 0.0
          %483 = vst [vmem:[#allocation2 + $0x58] sm:$0xff] 0.0
          %484 = vst [vmem:[#allocation2 + $0x60] sm:$0xff] 0.0
          %485 = vst [vmem:[#allocation2 + $0x68] sm:$0xff] 0.0
          %486 = vst [vmem:[#allocation2 + $0x70] sm:$0xff] 0.0
          %487 = vst [vmem:[#allocation2 + $0x78] sm:$0xff] 0.0
        $region68: #{tpu_custom_call.1} parent=47 // pred_fallthru
          _
        %s488 = smul.u32 %s35, 128
        %s489 = scalar_lea.vmem %s375, %s488 [#allocation3]
        %v490 = vld [vmem:[%s489] sm:$0xff]
        %v491 = vld [vmem:[%s489 + $0x8] sm:$0xff]
        %v492 = vld [vmem:[%s489 + $0x10] sm:$0xff]
        %v493 = vld [vmem:[%s489 + $0x18] sm:$0xff]
        %v494 = vld [vmem:[%s489 + $0x20] sm:$0xff]
        %v495 = vld [vmem:[%s489 + $0x28] sm:$0xff]
        %v496 = vld [vmem:[%s489 + $0x30] sm:$0xff]
        %v497 = vld [vmem:[%s489 + $0x38] sm:$0xff]
        %v498 = vld [vmem:[%s489 + $0x40] sm:$0xff]
        %v499 = vld [vmem:[%s489 + $0x48] sm:$0xff]
        %v500 = vld [vmem:[%s489 + $0x50] sm:$0xff]
        %v501 = vld [vmem:[%s489 + $0x58] sm:$0xff]
        %v502 = vld [vmem:[%s489 + $0x60] sm:$0xff]
        %v503 = vld [vmem:[%s489 + $0x68] sm:$0xff]
        %v504 = vld [vmem:[%s489 + $0x70] sm:$0xff]
        %v505 = vld [vmem:[%s489 + $0x78] sm:$0xff]
        %v506 = vld [vmem:[%s384] sm:$0xff]
        %v507 = vld [vmem:[%s384 + $0x8] sm:$0xff]
        %v508 = vld [vmem:[%s384 + $0x10] sm:$0xff]
        %v509 = vld [vmem:[%s384 + $0x18] sm:$0xff]
        %v510 = vunpack.c.0.s8 %v506
        %v511 = vunpack.c.1.s8 %v506
        %v512 = vunpack.c.2.s8 %v506
        %v513 = vunpack.c.3.s8 %v506
        %v514 = vunpack.c.0.s8 %v507
        %v515 = vunpack.c.1.s8 %v507
        %v516 = vunpack.c.2.s8 %v507
        %v517 = vunpack.c.3.s8 %v507
        %v518 = vunpack.c.0.s8 %v508
        %v519 = vunpack.c.1.s8 %v508
        %v520 = vunpack.c.2.s8 %v508
        %v521 = vunpack.c.3.s8 %v508
        %v522 = vunpack.c.0.s8 %v509
        %v523 = vunpack.c.1.s8 %v509
        %v524 = vunpack.c.2.s8 %v509
        %v525 = vunpack.c.3.s8 %v509
        %v526 = vcvt.s32.f32 %v510
        %v527 = vcvt.s32.f32 %v511
        %v528 = vcvt.s32.f32 %v512
        %v529 = vcvt.s32.f32 %v513
        %v530 = vcvt.s32.f32 %v514
        %v531 = vcvt.s32.f32 %v515
        %v532 = vcvt.s32.f32 %v516
        %v533 = vcvt.s32.f32 %v517
        %v534 = vcvt.s32.f32 %v518
        %v535 = vcvt.s32.f32 %v519
        %v536 = vcvt.s32.f32 %v520
        %v537 = vcvt.s32.f32 %v521
        %v538 = vcvt.s32.f32 %v522
        %v539 = vcvt.s32.f32 %v523
        %v540 = vcvt.s32.f32 %v524
        %v541 = vcvt.s32.f32 %v525
        %v542 = vld [vmem:[#allocation2] sm:$0xff]
        %v543 = vld [vmem:[#allocation2 + $0x8] sm:$0xff]
        %v544 = vld [vmem:[#allocation2 + $0x10] sm:$0xff]
        %v545 = vld [vmem:[#allocation2 + $0x18] sm:$0xff]
        %v546 = vld [vmem:[#allocation2 + $0x20] sm:$0xff]
        %v547 = vld [vmem:[#allocation2 + $0x28] sm:$0xff]
        %v548 = vld [vmem:[#allocation2 + $0x30] sm:$0xff]
        %v549 = vld [vmem:[#allocation2 + $0x38] sm:$0xff]
        %v550 = vld [vmem:[#allocation2 + $0x40] sm:$0xff]
        %v551 = vld [vmem:[#allocation2 + $0x48] sm:$0xff]
        %v552 = vld [vmem:[#allocation2 + $0x50] sm:$0xff]
        %v553 = vld [vmem:[#allocation2 + $0x58] sm:$0xff]
        %v554 = vld [vmem:[#allocation2 + $0x60] sm:$0xff]
        %v555 = vld [vmem:[#allocation2 + $0x68] sm:$0xff]
        %v556 = vld [vmem:[#allocation2 + $0x70] sm:$0xff]
        %v557 = vld [vmem:[#allocation2 + $0x78] sm:$0xff]
        %558 = vmatprep.subr.mxu0 0.0
        %559 = vmatpush1.msra.mxu0 %v505
        %560 = vmatprep.subr.mxu0 0.0
        %561 = vmatpush1.msra.mxu0 %v504
        %562 = vmatprep.subr.mxu0 0.0
        %563 = vmatpush1.msra.mxu0 %v503
        %564 = vmatprep.subr.mxu0 0.0
        %565 = vmatpush1.msra.mxu0 %v502
        %566 = vmatprep.subr.mxu0 0.0
        %567 = vmatpush1.msra.mxu0 %v501
        %568 = vmatprep.subr.mxu0 0.0
        %569 = vmatpush1.msra.mxu0 %v500
        %570 = vmatprep.subr.mxu0 0.0
        %571 = vmatpush1.msra.mxu0 %v499
        %572 = vmatprep.subr.mxu0 0.0
        %573 = vmatpush1.msra.mxu0 %v498
        %574 = vmatprep.subr.mxu0 0.0
        %575 = vmatpush1.msra.mxu0 %v497
        %576 = vmatprep.subr.mxu0 0.0
        %577 = vmatpush1.msra.mxu0 %v496
        %578 = vmatprep.subr.mxu0 0.0
        %579 = vmatpush1.msra.mxu0 %v495
        %580 = vmatprep.subr.mxu0 0.0
        %581 = vmatpush1.msra.mxu0 %v494
        %582 = vmatprep.subr.mxu0 0.0
        %583 = vmatpush1.msra.mxu0 %v493
        %584 = vmatprep.subr.mxu0 0.0
        %585 = vmatpush1.msra.mxu0 %v492
        %586 = vmatprep.subr.mxu0 0.0
        %587 = vmatpush1.msra.mxu0 %v491
        %588 = vmatprep.subr.mxu0 0.0
        %589 = vmatpush1.msra.mxu0 %v490
        %590 = vmatprep.subr.mxu0 0.0
        %591 = vmatpush2.msra.mxu0 0.0
        %592 = vmatprep.subr.mxu0 0.0
        %593 = vmatpush2.msra.mxu0 0.0
        %594 = vmatprep.subr.mxu0 0.0
        %595 = vmatpush2.msra.mxu0 0.0
        %596 = vmatprep.subr.mxu0 0.0
        %597 = vmatpush2.msra.mxu0 0.0
        %598 = vmatprep.subr.mxu0 0.0
        %599 = vmatpush2.msra.mxu0 0.0
        %600 = vmatprep.subr.mxu0 0.0
        %601 = vmatpush2.msra.mxu0 0.0
        %602 = vmatprep.subr.mxu0 0.0
        %603 = vmatpush2.msra.mxu0 0.0
        %604 = vmatprep.subr.mxu0 0.0
        %605 = vmatpush2.msra.mxu0 0.0
        %606 = vmatprep.subr.mxu0 0.0
        %607 = vmatpush2.msra.mxu0 0.0
        %608 = vmatprep.subr.mxu0 0.0
        %609 = vmatpush2.msra.mxu0 0.0
        %610 = vmatprep.subr.mxu0 0.0
        %611 = vmatpush2.msra.mxu0 0.0
        %612 = vmatprep.subr.mxu0 0.0
        %613 = vmatpush2.msra.mxu0 0.0
        %614 = vmatprep.subr.mxu0 0.0
        %615 = vmatpush2.msra.mxu0 0.0
        %616 = vmatprep.subr.mxu0 0.0
        %617 = vmatpush2.msra.mxu0 0.0
        %618 = vmatprep.subr.mxu0 0.0
        %619 = vmatpush2.msra.mxu0 0.0
        %620 = vmatprep.subr.mxu0 0.0
        %621 = vmatpush2.msra.mxu0 0.0
        %622 = vmatprep.mubr.f32.mxu0 0.0
        %623 = vmatmul.mubr.f32.gmra.mxu0 %v526
        %v624 = vpop.f32.mrf.mxu0
        %v625 = vadd.f32 0.0, %v624
        %v626 = vpop.f32.mrf.mxu0
        %627 = vmatprep.mubr.f32.mxu0 0.0
        %628 = vmatmul.mubr.f32.gmra.mxu0 %v527
        %v629 = vpop.f32.mrf.mxu0
        %v630 = vadd.f32 0.0, %v629
        %v631 = vpop.f32.mrf.mxu0
        %632 = vmatprep.mubr.f32.mxu0 0.0
        %633 = vmatmul.mubr.f32.gmra.mxu0 %v528
        %v634 = vpop.f32.mrf.mxu0
        %v635 = vadd.f32 0.0, %v634
        %v636 = vpop.f32.mrf.mxu0
        %637 = vmatprep.mubr.f32.mxu0 0.0
        %638 = vmatmul.mubr.f32.gmra.mxu0 %v529
        %v639 = vpop.f32.mrf.mxu0
        %v640 = vadd.f32 0.0, %v639
        %v641 = vpop.f32.mrf.mxu0
        %642 = vmatprep.mubr.f32.mxu0 0.0
        %643 = vmatmul.mubr.f32.gmra.mxu0 %v530
        %v644 = vpop.f32.mrf.mxu0
        %v645 = vadd.f32 0.0, %v644
        %v646 = vpop.f32.mrf.mxu0
        %647 = vmatprep.mubr.f32.mxu0 0.0
        %648 = vmatmul.mubr.f32.gmra.mxu0 %v531
        %v649 = vpop.f32.mrf.mxu0
        %v650 = vadd.f32 0.0, %v649
        %v651 = vpop.f32.mrf.mxu0
        %652 = vmatprep.mubr.f32.mxu0 0.0
        %653 = vmatmul.mubr.f32.gmra.mxu0 %v532
        %v654 = vpop.f32.mrf.mxu0
        %v655 = vadd.f32 0.0, %v654
        %v656 = vpop.f32.mrf.mxu0
        %657 = vmatprep.mubr.f32.mxu0 0.0
        %658 = vmatmul.mubr.f32.gmra.mxu0 %v533
        %v659 = vpop.f32.mrf.mxu0
        %v660 = vadd.f32 0.0, %v659
        %v661 = vpop.f32.mrf.mxu0
        %662 = vmatprep.mubr.f32.mxu0 0.0
        %663 = vmatmul.mubr.f32.gmra.mxu0 %v534
        %v664 = vpop.f32.mrf.mxu0
        %v665 = vadd.f32 0.0, %v664
        %v666 = vpop.f32.mrf.mxu0
        %667 = vmatprep.mubr.f32.mxu0 0.0
        %668 = vmatmul.mubr.f32.gmra.mxu0 %v535
        %v669 = vpop.f32.mrf.mxu0
        %v670 = vadd.f32 0.0, %v669
        %v671 = vpop.f32.mrf.mxu0
        %672 = vmatprep.mubr.f32.mxu0 0.0
        %673 = vmatmul.mubr.f32.gmra.mxu0 %v536
        %v674 = vpop.f32.mrf.mxu0
        %v675 = vadd.f32 0.0, %v674
        %v676 = vpop.f32.mrf.mxu0
        %677 = vmatprep.mubr.f32.mxu0 0.0
        %678 = vmatmul.mubr.f32.gmra.mxu0 %v537
        %v679 = vpop.f32.mrf.mxu0
        %v680 = vadd.f32 0.0, %v679
        %v681 = vpop.f32.mrf.mxu0
        %682 = vmatprep.mubr.f32.mxu0 0.0
        %683 = vmatmul.mubr.f32.gmra.mxu0 %v538
        %v684 = vpop.f32.mrf.mxu0
        %v685 = vadd.f32 0.0, %v684
        %v686 = vpop.f32.mrf.mxu0
        %687 = vmatprep.mubr.f32.mxu0 0.0
        %688 = vmatmul.mubr.f32.gmra.mxu0 %v539
        %v689 = vpop.f32.mrf.mxu0
        %v690 = vadd.f32 0.0, %v689
        %v691 = vpop.f32.mrf.mxu0
        %692 = vmatprep.mubr.f32.mxu0 0.0
        %693 = vmatmul.mubr.f32.gmra.mxu0 %v540
        %v694 = vpop.f32.mrf.mxu0
        %v695 = vadd.f32 0.0, %v694
        %v696 = vpop.f32.mrf.mxu0
        %697 = vmatprep.mubr.f32.mxu0 0.0
        %698 = vmatmul.mubr.f32.gmra.mxu0 %v541
        %v699 = vpop.f32.mrf.mxu0
        %v700 = vadd.f32 0.0, %v699
        %v701 = vpop.f32.mrf.mxu0
        %702 = vdwg.mxu0
        %v703 = vadd.f32 %v542, %v625
        %v704 = vadd.f32 %v543, %v630
        %v705 = vadd.f32 %v544, %v635
        %v706 = vadd.f32 %v545, %v640
        %v707 = vadd.f32 %v546, %v645
        %v708 = vadd.f32 %v547, %v650
        %v709 = vadd.f32 %v548, %v655
        %v710 = vadd.f32 %v549, %v660
        %v711 = vadd.f32 %v550, %v665
        %v712 = vadd.f32 %v551, %v670
        %v713 = vadd.f32 %v552, %v675
        %v714 = vadd.f32 %v553, %v680
        %v715 = vadd.f32 %v554, %v685
        %v716 = vadd.f32 %v555, %v690
        %v717 = vadd.f32 %v556, %v695
        %v718 = vadd.f32 %v557, %v700
        %719 = vst [vmem:[#allocation2] sm:$0xff] %v703
        %720 = vst [vmem:[#allocation2 + $0x8] sm:$0xff] %v704
        %721 = vst [vmem:[#allocation2 + $0x10] sm:$0xff] %v705
        %722 = vst [vmem:[#allocation2 + $0x18] sm:$0xff] %v706
        %723 = vst [vmem:[#allocation2 + $0x20] sm:$0xff] %v707
        %724 = vst [vmem:[#allocation2 + $0x28] sm:$0xff] %v708
        %725 = vst [vmem:[#allocation2 + $0x30] sm:$0xff] %v709
        %726 = vst [vmem:[#allocation2 + $0x38] sm:$0xff] %v710
        %727 = vst [vmem:[#allocation2 + $0x40] sm:$0xff] %v711
        %728 = vst [vmem:[#allocation2 + $0x48] sm:$0xff] %v712
        %729 = vst [vmem:[#allocation2 + $0x50] sm:$0xff] %v713
        %730 = vst [vmem:[#allocation2 + $0x58] sm:$0xff] %v714
        %731 = vst [vmem:[#allocation2 + $0x60] sm:$0xff] %v715
        %732 = vst [vmem:[#allocation2 + $0x68] sm:$0xff] %v716
        %733 = vst [vmem:[#allocation2 + $0x70] sm:$0xff] %v717
        %734 = vst [vmem:[#allocation2 + $0x78] sm:$0xff] %v718
        // Predicated region
        $region69: #{tpu_custom_call.1} parent=47 // pred_check
          %p735 = pneg %p468
        $region70: #{tpu_custom_call.1} parent=47 // pred_check_branch
          %737 = sbr.rel (%p735) target = $region72
        $region71: #{tpu_custom_call.1} parent=47 // pred_region
          %v738 = vld [vmem:[#allocation2] sm:$0xff]
          %v739 = vld [vmem:[#allocation2 + $0x8] sm:$0xff]
          %v740 = vld [vmem:[#allocation2 + $0x10] sm:$0xff]
          %v741 = vld [vmem:[#allocation2 + $0x18] sm:$0xff]
          %v742 = vld [vmem:[#allocation2 + $0x20] sm:$0xff]
          %v743 = vld [vmem:[#allocation2 + $0x28] sm:$0xff]
          %v744 = vld [vmem:[#allocation2 + $0x30] sm:$0xff]
          %v745 = vld [vmem:[#allocation2 + $0x38] sm:$0xff]
          %v746 = vld [vmem:[#allocation2 + $0x40] sm:$0xff]
          %v747 = vld [vmem:[#allocation2 + $0x48] sm:$0xff]
          %v748 = vld [vmem:[#allocation2 + $0x50] sm:$0xff]
          %v749 = vld [vmem:[#allocation2 + $0x58] sm:$0xff]
          %v750 = vld [vmem:[#allocation2 + $0x60] sm:$0xff]
          %v751 = vld [vmem:[#allocation2 + $0x68] sm:$0xff]
          %v752 = vld [vmem:[#allocation2 + $0x70] sm:$0xff]
          %v753 = vld [vmem:[#allocation2 + $0x78] sm:$0xff]
          %v754 = vld [vmem:[#allocation8] sm:$0xff]
          %v755 = vld [vmem:[#allocation8 + $0x8] sm:$0xff]
          %v756 = vld [vmem:[#allocation8 + $0x10] sm:$0xff]
          %v757 = vld [vmem:[#allocation8 + $0x18] sm:$0xff]
          %v758 = vld [vmem:[#allocation8 + $0x20] sm:$0xff]
          %v759 = vld [vmem:[#allocation8 + $0x28] sm:$0xff]
          %v760 = vld [vmem:[#allocation8 + $0x30] sm:$0xff]
          %v761 = vld [vmem:[#allocation8 + $0x38] sm:$0xff]
          %v762 = vld [vmem:[#allocation8 + $0x40] sm:$0xff]
          %v763 = vld [vmem:[#allocation8 + $0x48] sm:$0xff]
          %v764 = vld [vmem:[#allocation8 + $0x50] sm:$0xff]
          %v765 = vld [vmem:[#allocation8 + $0x58] sm:$0xff]
          %v766 = vld [vmem:[#allocation8 + $0x60] sm:$0xff]
          %v767 = vld [vmem:[#allocation8 + $0x68] sm:$0xff]
          %v768 = vld [vmem:[#allocation8 + $0x70] sm:$0xff]
          %v769 = vld [vmem:[#allocation8 + $0x78] sm:$0xff]
          %770 = vmatprep.subr.mxu0 0.0
          %771 = vmatpush1.msra.mxu0 %v769
          %772 = vmatprep.subr.mxu0 0.0
          %773 = vmatpush1.msra.mxu0 %v768
          %774 = vmatprep.subr.mxu0 0.0
          %775 = vmatpush1.msra.mxu0 %v767
          %776 = vmatprep.subr.mxu0 0.0
          %777 = vmatpush1.msra.mxu0 %v766
          %778 = vmatprep.subr.mxu0 0.0
          %779 = vmatpush1.msra.mxu0 %v765
          %780 = vmatprep.subr.mxu0 0.0
          %781 = vmatpush1.msra.mxu0 %v764
          %782 = vmatprep.subr.mxu0 0.0
          %783 = vmatpush1.msra.mxu0 %v763
          %784 = vmatprep.subr.mxu0 0.0
          %785 = vmatpush1.msra.mxu0 %v762
          %786 = vmatprep.subr.mxu0 0.0
          %787 = vmatpush1.msra.mxu0 %v761
          %788 = vmatprep.subr.mxu0 0.0
          %789 = vmatpush1.msra.mxu0 %v760
          %790 = vmatprep.subr.mxu0 0.0
          %791 = vmatpush1.msra.mxu0 %v759
          %792 = vmatprep.subr.mxu0 0.0
          %793 = vmatpush1.msra.mxu0 %v758
          %794 = vmatprep.subr.mxu0 0.0
          %795 = vmatpush1.msra.mxu0 %v757
          %796 = vmatprep.subr.mxu0 0.0
          %797 = vmatpush1.msra.mxu0 %v756
          %798 = vmatprep.subr.mxu0 0.0
          %799 = vmatpush1.msra.mxu0 %v755
          %800 = vmatprep.subr.mxu0 0.0
          %801 = vmatpush1.msra.mxu0 %v754
          %802 = vmatprep.subr.mxu0 0.0
          %803 = vmatpush2.msra.mxu0 0.0
          %804 = vmatprep.subr.mxu0 0.0
          %805 = vmatpush2.msra.mxu0 0.0
          %806 = vmatprep.subr.mxu0 0.0
          %807 = vmatpush2.msra.mxu0 0.0
          %808 = vmatprep.subr.mxu0 0.0
          %809 = vmatpush2.msra.mxu0 0.0
          %810 = vmatprep.subr.mxu0 0.0
          %811 = vmatpush2.msra.mxu0 0.0
          %812 = vmatprep.subr.mxu0 0.0
          %813 = vmatpush2.msra.mxu0 0.0
          %814 = vmatprep.subr.mxu0 0.0
          %815 = vmatpush2.msra.mxu0 0.0
          %816 = vmatprep.subr.mxu0 0.0
          %817 = vmatpush2.msra.mxu0 0.0
          %818 = vmatprep.subr.mxu0 0.0
          %819 = vmatpush2.msra.mxu0 0.0
          %820 = vmatprep.subr.mxu0 0.0
          %821 = vmatpush2.msra.mxu0 0.0
          %822 = vmatprep.subr.mxu0 0.0
          %823 = vmatpush2.msra.mxu0 0.0
          %824 = vmatprep.subr.mxu0 0.0
          %825 = vmatpush2.msra.mxu0 0.0
          %826 = vmatprep.subr.mxu0 0.0
          %827 = vmatpush2.msra.mxu0 0.0
          %828 = vmatprep.subr.mxu0 0.0
          %829 = vmatpush2.msra.mxu0 0.0
          %830 = vmatprep.subr.mxu0 0.0
          %831 = vmatpush2.msra.mxu0 0.0
          %832 = vmatprep.subr.mxu0 0.0
          %833 = vmatpush2.msra.mxu0 0.0
          %834 = vmatprep.mubr.f32.mxu0 0.0
          %835 = vmatmul.mubr.f32.gmra.mxu0 %v738
          %v836 = vpop.f32.mrf.mxu0
          %v837 = vadd.f32 0.0, %v836
          %v838 = vpop.f32.mrf.mxu0
          %839 = vmatprep.mubr.f32.mxu0 0.0
          %840 = vmatmul.mubr.f32.gmra.mxu0 %v739
          %v841 = vpop.f32.mrf.mxu0
          %v842 = vadd.f32 0.0, %v841
          %v843 = vpop.f32.mrf.mxu0
          %844 = vmatprep.mubr.f32.mxu0 0.0
          %845 = vmatmul.mubr.f32.gmra.mxu0 %v740
          %v846 = vpop.f32.mrf.mxu0
          %v847 = vadd.f32 0.0, %v846
          %v848 = vpop.f32.mrf.mxu0
          %849 = vmatprep.mubr.f32.mxu0 0.0
          %850 = vmatmul.mubr.f32.gmra.mxu0 %v741
          %v851 = vpop.f32.mrf.mxu0
          %v852 = vadd.f32 0.0, %v851
          %v853 = vpop.f32.mrf.mxu0
          %854 = vmatprep.mubr.f32.mxu0 0.0
          %855 = vmatmul.mubr.f32.gmra.mxu0 %v742
          %v856 = vpop.f32.mrf.mxu0
          %v857 = vadd.f32 0.0, %v856
          %v858 = vpop.f32.mrf.mxu0
          %859 = vmatprep.mubr.f32.mxu0 0.0
          %860 = vmatmul.mubr.f32.gmra.mxu0 %v743
          %v861 = vpop.f32.mrf.mxu0
          %v862 = vadd.f32 0.0, %v861
          %v863 = vpop.f32.mrf.mxu0
          %864 = vmatprep.mubr.f32.mxu0 0.0
          %865 = vmatmul.mubr.f32.gmra.mxu0 %v744
          %v866 = vpop.f32.mrf.mxu0
          %v867 = vadd.f32 0.0, %v866
          %v868 = vpop.f32.mrf.mxu0
          %869 = vmatprep.mubr.f32.mxu0 0.0
          %870 = vmatmul.mubr.f32.gmra.mxu0 %v745
          %v871 = vpop.f32.mrf.mxu0
          %v872 = vadd.f32 0.0, %v871
          %v873 = vpop.f32.mrf.mxu0
          %874 = vmatprep.mubr.f32.mxu0 0.0
          %875 = vmatmul.mubr.f32.gmra.mxu0 %v746
          %v876 = vpop.f32.mrf.mxu0
          %v877 = vadd.f32 0.0, %v876
          %v878 = vpop.f32.mrf.mxu0
          %879 = vmatprep.mubr.f32.mxu0 0.0
          %880 = vmatmul.mubr.f32.gmra.mxu0 %v747
          %v881 = vpop.f32.mrf.mxu0
          %v882 = vadd.f32 0.0, %v881
          %v883 = vpop.f32.mrf.mxu0
          %884 = vmatprep.mubr.f32.mxu0 0.0
          %885 = vmatmul.mubr.f32.gmra.mxu0 %v748
          %v886 = vpop.f32.mrf.mxu0
          %v887 = vadd.f32 0.0, %v886
          %v888 = vpop.f32.mrf.mxu0
          %889 = vmatprep.mubr.f32.mxu0 0.0
          %890 = vmatmul.mubr.f32.gmra.mxu0 %v749
          %v891 = vpop.f32.mrf.mxu0
          %v892 = vadd.f32 0.0, %v891
          %v893 = vpop.f32.mrf.mxu0
          %894 = vmatprep.mubr.f32.mxu0 0.0
          %895 = vmatmul.mubr.f32.gmra.mxu0 %v750
          %v896 = vpop.f32.mrf.mxu0
          %v897 = vadd.f32 0.0, %v896
          %v898 = vpop.f32.mrf.mxu0
          %899 = vmatprep.mubr.f32.mxu0 0.0
          %900 = vmatmul.mubr.f32.gmra.mxu0 %v751
          %v901 = vpop.f32.mrf.mxu0
          %v902 = vadd.f32 0.0, %v901
          %v903 = vpop.f32.mrf.mxu0
          %904 = vmatprep.mubr.f32.mxu0 0.0
          %905 = vmatmul.mubr.f32.gmra.mxu0 %v752
          %v906 = vpop.f32.mrf.mxu0
          %v907 = vadd.f32 0.0, %v906
          %v908 = vpop.f32.mrf.mxu0
          %909 = vmatprep.mubr.f32.mxu0 0.0
          %910 = vmatmul.mubr.f32.gmra.mxu0 %v753
          %v911 = vpop.f32.mrf.mxu0
          %v912 = vadd.f32 0.0, %v911
          %v913 = vpop.f32.mrf.mxu0
          %914 = vdwg.mxu0
          %v915 = vld [vmem:[%s464] sm:$0xff]
          %v916 = vld [vmem:[%s464 + $0x8] sm:$0xff]
          %v917 = vld [vmem:[%s464 + $0x10] sm:$0xff]
          %v918 = vld [vmem:[%s464 + $0x18] sm:$0xff]
          %v919 = vld [vmem:[%s464 + $0x20] sm:$0xff]
          %v920 = vld [vmem:[%s464 + $0x28] sm:$0xff]
          %v921 = vld [vmem:[%s464 + $0x30] sm:$0xff]
          %v922 = vld [vmem:[%s464 + $0x38] sm:$0xff]
          %v923 = vld [vmem:[%s464 + $0x40] sm:$0xff]
          %v924 = vld [vmem:[%s464 + $0x48] sm:$0xff]
          %v925 = vld [vmem:[%s464 + $0x50] sm:$0xff]
          %v926 = vld [vmem:[%s464 + $0x58] sm:$0xff]
          %v927 = vld [vmem:[%s464 + $0x60] sm:$0xff]
          %v928 = vld [vmem:[%s464 + $0x68] sm:$0xff]
          %v929 = vld [vmem:[%s464 + $0x70] sm:$0xff]
          %v930 = vld [vmem:[%s464 + $0x78] sm:$0xff]
          %v931 = vld [vmem:[#allocation9] sm:$0xff]
          %v932 = vld [vmem:[#allocation9 + $0x8] sm:$0xff]
          %v933 = vld [vmem:[#allocation9 + $0x10] sm:$0xff]
          %v934 = vld [vmem:[#allocation9 + $0x18] sm:$0xff]
          %v935 = vld [vmem:[#allocation9 + $0x20] sm:$0xff]
          %v936 = vld [vmem:[#allocation9 + $0x28] sm:$0xff]
          %v937 = vld [vmem:[#allocation9 + $0x30] sm:$0xff]
          %v938 = vld [vmem:[#allocation9 + $0x38] sm:$0xff]
          %v939 = vld [vmem:[#allocation9 + $0x40] sm:$0xff]
          %v940 = vld [vmem:[#allocation9 + $0x48] sm:$0xff]
          %v941 = vld [vmem:[#allocation9 + $0x50] sm:$0xff]
          %v942 = vld [vmem:[#allocation9 + $0x58] sm:$0xff]
          %v943 = vld [vmem:[#allocation9 + $0x60] sm:$0xff]
          %v944 = vld [vmem:[#allocation9 + $0x68] sm:$0xff]
          %v945 = vld [vmem:[#allocation9 + $0x70] sm:$0xff]
          %v946 = vld [vmem:[#allocation9 + $0x78] sm:$0xff]
          %v947 = vld [vmem:[%s454] sm:$0xff]
          %v948 = vld [vmem:[%s454 + $0x8] sm:$0xff]
          %v949 = vld [vmem:[%s454 + $0x10] sm:$0xff]
          %v950 = vld [vmem:[%s454 + $0x18] sm:$0xff]
          %v951 = vld [vmem:[%s454 + $0x20] sm:$0xff]
          %v952 = vld [vmem:[%s454 + $0x28] sm:$0xff]
          %v953 = vld [vmem:[%s454 + $0x30] sm:$0xff]
          %v954 = vld [vmem:[%s454 + $0x38] sm:$0xff]
          %v955 = vld [vmem:[%s454 + $0x40] sm:$0xff]
          %v956 = vld [vmem:[%s454 + $0x48] sm:$0xff]
          %v957 = vld [vmem:[%s454 + $0x50] sm:$0xff]
          %v958 = vld [vmem:[%s454 + $0x58] sm:$0xff]
          %v959 = vld [vmem:[%s454 + $0x60] sm:$0xff]
          %v960 = vld [vmem:[%s454 + $0x68] sm:$0xff]
          %v961 = vld [vmem:[%s454 + $0x70] sm:$0xff]
          %v962 = vld [vmem:[%s454 + $0x78] sm:$0xff]
          %964 = vset.pattern.permute.xlu0 0
          %965 = vperm.xlu0 %964, %v947
          %v966 = vpop.permute.xlu0 %965
          %969 = vset.pattern.permute.xlu0 0
          %970 = vperm.xlu0 %969, %v948
          %v971 = vpop.permute.xlu0 %970
          %974 = vset.pattern.permute.xlu0 0
          %975 = vperm.xlu0 %974, %v949
          %v976 = vpop.permute.xlu0 %975
          %979 = vset.pattern.permute.xlu0 0
          %980 = vperm.xlu0 %979, %v950
          %v981 = vpop.permute.xlu0 %980
          %984 = vset.pattern.permute.xlu0 0
          %985 = vperm.xlu0 %984, %v951
          %v986 = vpop.permute.xlu0 %985
          %989 = vset.pattern.permute.xlu0 0
          %990 = vperm.xlu0 %989, %v952
          %v991 = vpop.permute.xlu0 %990
          %994 = vset.pattern.permute.xlu0 0
          %995 = vperm.xlu0 %994, %v953
          %v996 = vpop.permute.xlu0 %995
          %999 = vset.pattern.permute.xlu0 0
          %1000 = vperm.xlu0 %999, %v954
          %v1001 = vpop.permute.xlu0 %1000
          %1004 = vset.pattern.permute.xlu0 0
          %1005 = vperm.xlu0 %1004, %v955
          %v1006 = vpop.permute.xlu0 %1005
          %1009 = vset.pattern.permute.xlu0 0
          %1010 = vperm.xlu0 %1009, %v956
          %v1011 = vpop.permute.xlu0 %1010
          %1014 = vset.pattern.permute.xlu0 0
          %1015 = vperm.xlu0 %1014, %v957
          %v1016 = vpop.permute.xlu0 %1015
          %1019 = vset.pattern.permute.xlu0 0
          %1020 = vperm.xlu0 %1019, %v958
          %v1021 = vpop.permute.xlu0 %1020
          %1024 = vset.pattern.permute.xlu0 0
          %1025 = vperm.xlu0 %1024, %v959
          %v1026 = vpop.permute.xlu0 %1025
          %1029 = vset.pattern.permute.xlu0 0
          %1030 = vperm.xlu0 %1029, %v960
          %v1031 = vpop.permute.xlu0 %1030
          %1034 = vset.pattern.permute.xlu0 0
          %1035 = vperm.xlu0 %1034, %v961
          %v1036 = vpop.permute.xlu0 %1035
          %1039 = vset.pattern.permute.xlu0 0
          %1040 = vperm.xlu0 %1039, %v962
          %v1041 = vpop.permute.xlu0 %1040
          %v1043 = vmul.f32 %v966, %v837
          %v1044 = vmul.f32 %v971, %v842
          %v1045 = vmul.f32 %v976, %v847
          %v1046 = vmul.f32 %v981, %v852
          %v1047 = vmul.f32 %v986, %v857
          %v1048 = vmul.f32 %v991, %v862
          %v1049 = vmul.f32 %v996, %v867
          %v1050 = vmul.f32 %v1001, %v872
          %v1051 = vmul.f32 %v1006, %v877
          %v1052 = vmul.f32 %v1011, %v882
          %v1053 = vmul.f32 %v1016, %v887
          %v1054 = vmul.f32 %v1021, %v892
          %v1055 = vmul.f32 %v1026, %v897
          %v1056 = vmul.f32 %v1031, %v902
          %v1057 = vmul.f32 %v1036, %v907
          %v1058 = vmul.f32 %v1041, %v912
          %1059 = vmatprep.subr.mxu0 0.0
          %1060 = vmatpush1.msra.mxu0 %v946
          %1061 = vmatprep.subr.mxu0 0.0
          %1062 = vmatpush1.msra.mxu0 %v945
          %1063 = vmatprep.subr.mxu0 0.0
          %1064 = vmatpush1.msra.mxu0 %v944
          %1065 = vmatprep.subr.mxu0 0.0
          %1066 = vmatpush1.msra.mxu0 %v943
          %1067 = vmatprep.subr.mxu0 0.0
          %1068 = vmatpush1.msra.mxu0 %v942
          %1069 = vmatprep.subr.mxu0 0.0
          %1070 = vmatpush1.msra.mxu0 %v941
          %1071 = vmatprep.subr.mxu0 0.0
          %1072 = vmatpush1.msra.mxu0 %v940
          %1073 = vmatprep.subr.mxu0 0.0
          %1074 = vmatpush1.msra.mxu0 %v939
          %1075 = vmatprep.subr.mxu0 0.0
          %1076 = vmatpush1.msra.mxu0 %v938
          %1077 = vmatprep.subr.mxu0 0.0
          %1078 = vmatpush1.msra.mxu0 %v937
          %1079 = vmatprep.subr.mxu0 0.0
          %1080 = vmatpush1.msra.mxu0 %v936
          %1081 = vmatprep.subr.mxu0 0.0
          %1082 = vmatpush1.msra.mxu0 %v935
          %1083 = vmatprep.subr.mxu0 0.0
          %1084 = vmatpush1.msra.mxu0 %v934
          %1085 = vmatprep.subr.mxu0 0.0
          %1086 = vmatpush1.msra.mxu0 %v933
          %1087 = vmatprep.subr.mxu0 0.0
          %1088 = vmatpush1.msra.mxu0 %v932
          %1089 = vmatprep.subr.mxu0 0.0
          %1090 = vmatpush1.msra.mxu0 %v931
          %1091 = vmatprep.subr.mxu0 0.0
          %1092 = vmatpush2.msra.mxu0 0.0
          %1093 = vmatprep.subr.mxu0 0.0
          %1094 = vmatpush2.msra.mxu0 0.0
          %1095 = vmatprep.subr.mxu0 0.0
          %1096 = vmatpush2.msra.mxu0 0.0
          %1097 = vmatprep.subr.mxu0 0.0
          %1098 = vmatpush2.msra.mxu0 0.0
          %1099 = vmatprep.subr.mxu0 0.0
          %1100 = vmatpush2.msra.mxu0 0.0
          %1101 = vmatprep.subr.mxu0 0.0
          %1102 = vmatpush2.msra.mxu0 0.0
          %1103 = vmatprep.subr.mxu0 0.0
          %1104 = vmatpush2.msra.mxu0 0.0
          %1105 = vmatprep.subr.mxu0 0.0
          %1106 = vmatpush2.msra.mxu0 0.0
          %1107 = vmatprep.subr.mxu0 0.0
          %1108 = vmatpush2.msra.mxu0 0.0
          %1109 = vmatprep.subr.mxu0 0.0
          %1110 = vmatpush2.msra.mxu0 0.0
          %1111 = vmatprep.subr.mxu0 0.0
          %1112 = vmatpush2.msra.mxu0 0.0
          %1113 = vmatprep.subr.mxu0 0.0
          %1114 = vmatpush2.msra.mxu0 0.0
          %1115 = vmatprep.subr.mxu0 0.0
          %1116 = vmatpush2.msra.mxu0 0.0
          %1117 = vmatprep.subr.mxu0 0.0
          %1118 = vmatpush2.msra.mxu0 0.0
          %1119 = vmatprep.subr.mxu0 0.0
          %1120 = vmatpush2.msra.mxu0 0.0
          %1121 = vmatprep.subr.mxu0 0.0
          %1122 = vmatpush2.msra.mxu0 0.0
          %1123 = vmatprep.mubr.f32.mxu0 0.0
          %1124 = vmatmul.mubr.f32.gmra.mxu0 %v915
          %v1125 = vpop.f32.mrf.mxu0
          %v1126 = vadd.f32 %v1043, %v1125
          %v1127 = vpop.f32.mrf.mxu0
          %1128 = vmatprep.mubr.f32.mxu0 0.0
          %1129 = vmatmul.mubr.f32.gmra.mxu0 %v916
          %v1130 = vpop.f32.mrf.mxu0
          %v1131 = vadd.f32 %v1044, %v1130
          %v1132 = vpop.f32.mrf.mxu0
          %1133 = vmatprep.mubr.f32.mxu0 0.0
          %1134 = vmatmul.mubr.f32.gmra.mxu0 %v917
          %v1135 = vpop.f32.mrf.mxu0
          %v1136 = vadd.f32 %v1045, %v1135
          %v1137 = vpop.f32.mrf.mxu0
          %1138 = vmatprep.mubr.f32.mxu0 0.0
          %1139 = vmatmul.mubr.f32.gmra.mxu0 %v918
          %v1140 = vpop.f32.mrf.mxu0
          %v1141 = vadd.f32 %v1046, %v1140
          %v1142 = vpop.f32.mrf.mxu0
          %1143 = vmatprep.mubr.f32.mxu0 0.0
          %1144 = vmatmul.mubr.f32.gmra.mxu0 %v919
          %v1145 = vpop.f32.mrf.mxu0
          %v1146 = vadd.f32 %v1047, %v1145
          %v1147 = vpop.f32.mrf.mxu0
          %1148 = vmatprep.mubr.f32.mxu0 0.0
          %1149 = vmatmul.mubr.f32.gmra.mxu0 %v920
          %v1150 = vpop.f32.mrf.mxu0
          %v1151 = vadd.f32 %v1048, %v1150
          %v1152 = vpop.f32.mrf.mxu0
          %1153 = vmatprep.mubr.f32.mxu0 0.0
          %1154 = vmatmul.mubr.f32.gmra.mxu0 %v921
          %v1155 = vpop.f32.mrf.mxu0
          %v1156 = vadd.f32 %v1049, %v1155
          %v1157 = vpop.f32.mrf.mxu0
          %1158 = vmatprep.mubr.f32.mxu0 0.0
          %1159 = vmatmul.mubr.f32.gmra.mxu0 %v922
          %v1160 = vpop.f32.mrf.mxu0
          %v1161 = vadd.f32 %v1050, %v1160
          %v1162 = vpop.f32.mrf.mxu0
          %1163 = vmatprep.mubr.f32.mxu0 0.0
          %1164 = vmatmul.mubr.f32.gmra.mxu0 %v923
          %v1165 = vpop.f32.mrf.mxu0
          %v1166 = vadd.f32 %v1051, %v1165
          %v1167 = vpop.f32.mrf.mxu0
          %1168 = vmatprep.mubr.f32.mxu0 0.0
          %1169 = vmatmul.mubr.f32.gmra.mxu0 %v924
          %v1170 = vpop.f32.mrf.mxu0
          %v1171 = vadd.f32 %v1052, %v1170
          %v1172 = vpop.f32.mrf.mxu0
          %1173 = vmatprep.mubr.f32.mxu0 0.0
          %1174 = vmatmul.mubr.f32.gmra.mxu0 %v925
          %v1175 = vpop.f32.mrf.mxu0
          %v1176 = vadd.f32 %v1053, %v1175
          %v1177 = vpop.f32.mrf.mxu0
          %1178 = vmatprep.mubr.f32.mxu0 0.0
          %1179 = vmatmul.mubr.f32.gmra.mxu0 %v926
          %v1180 = vpop.f32.mrf.mxu0
          %v1181 = vadd.f32 %v1054, %v1180
          %v1182 = vpop.f32.mrf.mxu0
          %1183 = vmatprep.mubr.f32.mxu0 0.0
          %1184 = vmatmul.mubr.f32.gmra.mxu0 %v927
          %v1185 = vpop.f32.mrf.mxu0
          %v1186 = vadd.f32 %v1055, %v1185
          %v1187 = vpop.f32.mrf.mxu0
          %1188 = vmatprep.mubr.f32.mxu0 0.0
          %1189 = vmatmul.mubr.f32.gmra.mxu0 %v928
          %v1190 = vpop.f32.mrf.mxu0
          %v1191 = vadd.f32 %v1056, %v1190
          %v1192 = vpop.f32.mrf.mxu0
          %1193 = vmatprep.mubr.f32.mxu0 0.0
          %1194 = vmatmul.mubr.f32.gmra.mxu0 %v929
          %v1195 = vpop.f32.mrf.mxu0
          %v1196 = vadd.f32 %v1057, %v1195
          %v1197 = vpop.f32.mrf.mxu0
          %1198 = vmatprep.mubr.f32.mxu0 0.0
          %1199 = vmatmul.mubr.f32.gmra.mxu0 %v930
          %v1200 = vpop.f32.mrf.mxu0
          %v1201 = vadd.f32 %v1058, %v1200
          %v1202 = vpop.f32.mrf.mxu0
          %1203 = vdwg.mxu0
          %v1204 = vld [vmem:[%s6] sm:$0x1]
          %v1206 = vlaneseq
          %v1207 = vshrl.u32 %v1206, 7
          %v1208 = vsub.s32 0, %v1207
          %v1209 = vrot.slane %v1204, %v1208
          %v1211 = vadd.f32 %v1126, %v1209
          %v1212 = vadd.f32 %v1131, %v1209
          %v1213 = vadd.f32 %v1136, %v1209
          %v1214 = vadd.f32 %v1141, %v1209
          %v1215 = vadd.f32 %v1146, %v1209
          %v1216 = vadd.f32 %v1151, %v1209
          %v1217 = vadd.f32 %v1156, %v1209
          %v1218 = vadd.f32 %v1161, %v1209
          %v1219 = vadd.f32 %v1166, %v1209
          %v1220 = vadd.f32 %v1171, %v1209
          %v1221 = vadd.f32 %v1176, %v1209
          %v1222 = vadd.f32 %v1181, %v1209
          %v1223 = vadd.f32 %v1186, %v1209
          %v1224 = vadd.f32 %v1191, %v1209
          %v1225 = vadd.f32 %v1196, %v1209
          %v1226 = vadd.f32 %v1201, %v1209
          %v1227 = vmax.f32 %v1211, 0.0
          %v1228 = vmax.f32 %v1212, 0.0
          %v1229 = vmax.f32 %v1213, 0.0
          %v1230 = vmax.f32 %v1214, 0.0
          %v1231 = vmax.f32 %v1215, 0.0
          %v1232 = vmax.f32 %v1216, 0.0
          %v1233 = vmax.f32 %v1217, 0.0
          %v1234 = vmax.f32 %v1218, 0.0
          %v1235 = vmax.f32 %v1219, 0.0
          %v1236 = vmax.f32 %v1220, 0.0
          %v1237 = vmax.f32 %v1221, 0.0
          %v1238 = vmax.f32 %v1222, 0.0
          %v1239 = vmax.f32 %v1223, 0.0
          %v1240 = vmax.f32 %v1224, 0.0
          %v1241 = vmax.f32 %v1225, 0.0
          %v1242 = vmax.f32 %v1226, 0.0
          %1243 = vst [vmem:[%s445] sm:$0xff] %v1227
          %1244 = vst [vmem:[%s445 + $0x8] sm:$0xff] %v1228
          %1245 = vst [vmem:[%s445 + $0x10] sm:$0xff] %v1229
          %1246 = vst [vmem:[%s445 + $0x18] sm:$0xff] %v1230
          %1247 = vst [vmem:[%s445 + $0x20] sm:$0xff] %v1231
          %1248 = vst [vmem:[%s445 + $0x28] sm:$0xff] %v1232
          %1249 = vst [vmem:[%s445 + $0x30] sm:$0xff] %v1233
          %1250 = vst [vmem:[%s445 + $0x38] sm:$0xff] %v1234
          %1251 = vst [vmem:[%s445 + $0x40] sm:$0xff] %v1235
          %1252 = vst [vmem:[%s445 + $0x48] sm:$0xff] %v1236
          %1253 = vst [vmem:[%s445 + $0x50] sm:$0xff] %v1237
          %1254 = vst [vmem:[%s445 + $0x58] sm:$0xff] %v1238
          %1255 = vst [vmem:[%s445 + $0x60] sm:$0xff] %v1239
          %1256 = vst [vmem:[%s445 + $0x68] sm:$0xff] %v1240
          %1257 = vst [vmem:[%s445 + $0x70] sm:$0xff] %v1241
          %1258 = vst [vmem:[%s445 + $0x78] sm:$0xff] %v1242
        $region72: #{tpu_custom_call.1} parent=47 // pred_fallthru
          _
        %s1259 = sand.u32 %s232, 1
        %s1260 = scalar_lea.sflag [#allocation5], %s1259
        %s1261 = sand.u32 %s232, 1
        %s1262 = smul.addr %s1261, 128
        %s1263 = scalar_lea.vmem [#allocation11], %s1262
        // Predicated region
        $region73: #{tpu_custom_call.1} parent=47 // pred_check
          %p1264 = pneg %p242
        $region74: #{tpu_custom_call.1} parent=47 // pred_check_branch
          %1266 = sbr.rel (%p1264) target = $region76
        $region75: #{tpu_custom_call.1} parent=47 // pred_region
          %s1267 = smul.u32 16, %s34
          %s1269 = ssub.s32 2048, 2048
          %1270 = vsyncadd %s1260, %s1269
          %s1271 = smul.addr %s33, 16
          %s1272 = sadd.s32 %s1267, %s1271
          %s1273 = smul.addr %s1272, 128
          %s1274 = scalar_lea.hbm %s7, %s1273
          %s1275 = sshll.u32 %s1263, 4
          %s1276 = int_to_ptr.vmem [resolvable:$true] %s1275
          %1281 = dma.vmem_to_hbm [thread:$0]  %s1276, 2048, %s1274, %s1260, 128, 128, 8
        $region76: #{tpu_custom_call.1} parent=47 // pred_fallthru
          _
      $region48: #{tpu_custom_call.1} parent=5 // pred_fallthru
        _
      %p1282 = scmp.le.s32.totalorder 2, %s23
      // Predicated region
      $region77: #{tpu_custom_call.1} parent=5 // pred_check
        %p1283 = pneg %p1282
      $region78: #{tpu_custom_call.1} parent=5 // pred_check_branch
        %1285 = sbr.rel (%p1283) target = $region80
      $region79: #{tpu_custom_call.1} parent=5 // pred_region
        %s1286 = ssub.s32 %s23, 2
        // Predicated region
        $region81: #{tpu_custom_call.1} parent=79 // pred_check
          %p1287 = pneg %p248
        $region82: #{tpu_custom_call.1} parent=79 // pred_check_branch
          %1289 = sbr.rel (%p1287) target = $region84
        $region83: #{tpu_custom_call.1} parent=79 // pred_region
          %s1290 = sand.u32 %s233, 1
          %s1291 = scalar_lea.sflag [#allocation5], %s1290
          %s1292 = sand.u32 %s233, 1
          %s1293 = smul.addr %s1292, 128
          %s1294 = scalar_lea.vmem [#allocation11], %s1293
          %1295 = dma.done %s1291, 2048
        $region84: #{tpu_custom_call.1} parent=79 // pred_fallthru
          _
      $region80: #{tpu_custom_call.1} parent=5 // pred_fallthru
        _
    $region6: #{tpu_custom_call.1} parent=1 // loop_footer
      %s27 = sadd.s32 1, %s23
    $region7: #{tpu_custom_call.1} parent=1 // loop_footer_branch
      %22 = sbr.rel target = $region3
    $region8: #{tpu_custom_call.1} parent=1 // loop_exit
      _
    %1296 = vsyncpa [#allocation4], 1
    %s1297 = scalar_lea.sflag [#allocation4], 1
    %1298 = vsyncpa %s1297, 1
    %1299 = vsyncpa [#allocation7], 1
    %s1300 = scalar_lea.sflag [#allocation7], 1
    %1301 = vsyncpa %s1300, 1
    %1302 = vsyncpa [#allocation10], 1
    %1303 = vsyncpa [#allocation5], 1
    %s1304 = scalar_lea.sflag [#allocation5], 1
    %1305 = vsyncpa %s1304, 1

</llo_original>
